<compile_context>
chip_gen: v5e
topology: v5e:2x2
jax: 0.10.0
libtpu: 0.0.40
codegen_flags: <defaults>
</compile_context>

<pallas_src>
import functools

import jax
import jax.numpy as jnp
from jax.experimental import pallas as pl
from jax.experimental.pallas import tpu as pltpu


def _round_up(x: int, m: int) -> int:
    return (x + m - 1) // m * m


def _vmem_limit_bytes() -> int:
    """Generation-aware scoped-VMEM limit (v7x has 64 MiB/TC, v5e/v6e 128 MiB)."""
    cap = 128 * 1024 * 1024
    try:
        info = pltpu.get_tpu_info()
        cap = int(getattr(info, "vmem_capacity_bytes", cap))
    except Exception:
        pass
    # Leave headroom for compiler-internal scratch; cap at 100 MiB.
    return min(max((cap * 3) // 4, 32 * 1024 * 1024), 100 * 1024 * 1024)


def _default_max_tile_m(c: int, cout: int, in_bytes: int, out_bytes: int,
                        vmem_limit: int) -> int:
    """Rough per-output-row VMEM cost -> largest sensible flattened tile size."""
    per_m = (4 * c * in_bytes * 2      # 4 bf16 phase inputs, double-buffered
             + cout * out_bytes * 2    # output block, double-buffered
             + cout * 4                # f32 accumulator
             + 2 * c * in_bytes)       # tap temporaries
    budget = max(vmem_limit // 2, 4 * 1024 * 1024)
    m = budget // max(per_m, 1)
    m = int(max(256, min(m, 8192)))
    return (m // 128) * 128 if m >= 128 else m


def _pick_tile_ho(ho: int, wo_p: int, *, max_tile_m: int) -> int:
    """Pick a row-tile size.  Multi-tile requires tile_ho*wo_p % 128 == 0 so the
    flattened output block stays lane-dense and BlockSpec-legal."""
    if ho * wo_p <= max_tile_m:
        return ho
    cap = max(1, max_tile_m // wo_p)
    for th in range(min(ho, cap), 0, -1):          # prefer divisors of ho
        if (th * wo_p) % 128 == 0 and ho % th == 0:
            return th
    for th in range(min(ho, cap), 0, -1):          # allow padding ho
        if (th * wo_p) % 128 == 0:
            return th
    return ho                                      # fall back: one tile per sample


# ---------------------------------------------------------------------------
# Pallas kernel: strided 3x3 conv on one (sample, row-tile); 9 accumulating
# matmuls, bf16 operands, f32 accumulation, bias fused, optional channel-major
# (lane-dense) store.
# ---------------------------------------------------------------------------
def _downsample_conv_kernel(x00_ref, x01_ref, x10_ref, x11_ref,
                            h00_ref, h01_ref, w_ref, b_ref, o_ref,
                            *, tile_ho, wo, transpose_out):
    """Phase refs x??: (1, tile_ho, wo+1, C) -- padded-input pixels whose
    (row, col) parities are (p, q), rows [i*tile_ho, (i+1)*tile_ho).
    h00/h01: (1, 1, wo+1, C) -- the one extra even-parity row ((i+1)*tile_ho)
    needed by the ky=2 taps (tile halo).
    w_ref: (9, C, Cout), taps ordered (ky, kx).  b_ref: (1, Cout) f32.
    o_ref: (1, Cout, tile_ho*wo) if transpose_out else (1, tile_ho*wo, Cout).
    """
    c = x00_ref.shape[-1]
    m = tile_ho * wo

    a00 = x00_ref[0]          # (tile_ho, wo+1, C)
    a01 = x01_ref[0]
    a10 = x10_ref[0]
    a11 = x11_ref[0]
    h00 = h00_ref[0]          # (1, wo+1, C)
    h01 = h01_ref[0]

    # Even-parity rows shifted down by one output row (for ky == 2 taps).
    if tile_ho == 1:
        a00d, a01d = h00, h01
    else:
        a00d = jnp.concatenate([a00[1:], h00], axis=0)
        a01d = jnp.concatenate([a01[1:], h01], axis=0)

    # Tap (ky, kx) of the 3x3 window at output (oh, ow) reads padded pixel
    # (2*oh+ky, 2*ow+kx) = phase (ky%2, kx%2) at offset (ky//2, kx//2).
    taps = (
        (a00, 0), (a01, 0), (a00, 1),     # ky = 0
        (a10, 0), (a11, 0), (a10, 1),     # ky = 1
        (a00d, 0), (a01d, 0), (a00d, 1),  # ky = 2
    )

    acc = None
    for t_idx, (arr, dx) in enumerate(taps):
        v = arr[:, dx:dx + wo, :].reshape(m, c)                  # (M, C) bf16
        p = jnp.dot(v, w_ref[t_idx], preferred_element_type=jnp.float32)
        acc = p if acc is None else acc + p                       # f32 accumulate
    acc = acc + b_ref[...].astype(jnp.float32)                    # bias in f32

    if transpose_out:
        # Channel-major store: output is already NCHW and lane-dense for small Cout.
        o_ref[0] = acc.T.astype(o_ref.dtype)
    else:
        o_ref[0] = acc.astype(o_ref.dtype)


# ---------------------------------------------------------------------------
# Wrapper (layout plumbing + pallas_call)
# ---------------------------------------------------------------------------
def downsample_forward(x_nchw, t, w_hwio, bias, *,
                       compute_dtype=jnp.bfloat16, max_tile_m=None):
    """Pallas equivalent of Downsample.forward (tensor_dim == 2)."""
    del t  # the reference forward ignores the time embedding
    B, C, H, W = x_nchw.shape
    kh, kw, cin, cout = w_hwio.shape
    assert (kh, kw, cin) == (3, 3, C)
    out_dtype = x_nchw.dtype

    ho = (H - 1) // 2 + 1             # conv(k=3, s=2, p=1) output height
    wo = (W - 1) // 2 + 1
    wo_p = _round_up(wo, 8)           # sublane-aligned per-tap flatten

    in_bytes = jnp.dtype(compute_dtype).itemsize
    out_bytes = jnp.dtype(out_dtype).itemsize
    vmem_limit = _vmem_limit_bytes()
    if max_tile_m is None:
        max_tile_m = _default_max_tile_m(C, cout, in_bytes, out_bytes, vmem_limit)
    tile_ho = _pick_tile_ho(ho, wo_p, max_tile_m=max_tile_m)
    n_tiles = pl.cdiv(ho, tile_ho)
    ho_p = n_tiles * tile_ho
    tile_m = tile_ho * wo_p

    # NCHW -> NHWC (channels on lanes), cast to bf16, zero-pad so the padded
    # extent is exactly 2*(ho_p+1) x 2*(wo_p+1); extra zeros only feed output
    # rows/cols that are sliced off below.
    x = jnp.transpose(x_nchw, (0, 2, 3, 1)).astype(compute_dtype)
    xp = jnp.pad(x, ((0, 0),
                     (1, 2 * (ho_p + 1) - H - 1),
                     (1, 2 * (wo_p + 1) - W - 1),
                     (0, 0)))

    # Even/odd phase decomposition (one pass in the wrapper; all in-kernel tap
    # accesses are contiguous slices of VMEM-resident tiles).
    xr = xp.reshape(B, ho_p + 1, 2, wo_p + 1, 2, C)
    x00 = xr[:, :, 0, :, 0, :]        # (B, ho_p+1, wo_p+1, C)
    x01 = xr[:, :, 0, :, 1, :]
    x10 = xr[:, :, 1, :, 0, :]
    x11 = xr[:, :, 1, :, 1, :]
    # One-row halos (row (i+1)*tile_ho of the even-parity phases) per row-tile.
    h00 = x00[:, tile_ho::tile_ho][:, :n_tiles]   # (B, n_tiles, wo_p+1, C)
    h01 = x01[:, tile_ho::tile_ho][:, :n_tiles]

    wf = w_hwio.reshape(9, C, cout).astype(compute_dtype)   # taps ordered (ky, kx)
    bias2d = bias.reshape(1, cout).astype(jnp.float32)

    transpose_out = cout < 128
    if transpose_out:
        out_shape = jax.ShapeDtypeStruct((B, cout, ho_p * wo_p), out_dtype)
        out_spec = pl.BlockSpec((1, cout, tile_m), lambda b, i: (b, 0, i))
    else:
        out_shape = jax.ShapeDtypeStruct((B, ho_p * wo_p, cout), out_dtype)
        out_spec = pl.BlockSpec((1, tile_m, cout), lambda b, i: (b, i, 0))

    phase_spec = pl.BlockSpec((1, tile_ho, wo_p + 1, C), lambda b, i: (b, i, 0, 0))
    halo_spec = pl.BlockSpec((1, 1, wo_p + 1, C), lambda b, i: (b, i, 0, 0))

    out_flat = pl.pallas_call(
        functools.partial(_downsample_conv_kernel, tile_ho=tile_ho, wo=wo_p,
                          transpose_out=transpose_out),
        out_shape=out_shape,
        grid=(B, n_tiles),
        in_specs=[phase_spec, phase_spec, phase_spec, phase_spec,
                  halo_spec, halo_spec,
                  pl.BlockSpec((9, C, cout), lambda b, i: (0, 0, 0)),
                  pl.BlockSpec((1, cout), lambda b, i: (0, 0))],
        out_specs=out_spec,
        compiler_params=pltpu.CompilerParams(
            dimension_semantics=("parallel", "parallel"),
            vmem_limit_bytes=vmem_limit),
    )(x00, x01, x10, x11, h00, h01, wf, bias2d)

    if transpose_out:
        # Already channel-major: reshape straight to NCHW, drop padded rows/cols.
        out = out_flat.reshape(B, cout, ho_p, wo_p)[:, :, :ho, :wo]
    else:
        out = out_flat.reshape(B, ho_p, wo_p, cout)[:, :ho, :wo, :]
        out = jnp.transpose(out, (0, 3, 1, 2))
    return out


if __name__ == "__main__":
    # Correctness-scale shapes only.  For performance work, benchmark the whole
    # jit (wrapper ops included) at representative U-Net shapes (B>=8,
    # C in {128,256,512}, 32-128 spatial) via xprof, not these toys.
    def ref_conv(x, w, b):
        y = jax.lax.conv_general_dilated(
            x, w, window_strides=(2, 2), padding=((1, 1), (1, 1)),
            dimension_numbers=("NCHW", "HWIO", "NCHW"))
        return y + b[None, :, None, None]

    key = jax.random.PRNGKey(0)
    configs = [
        dict(B=2, C=8, H=16, W=16, max_tile_m=None),    # toy shape, Cout<128 path
        dict(B=1, C=8, H=15, W=14, max_tile_m=None),    # odd spatial -> wo padding
        dict(B=2, C=16, H=32, W=32, max_tile_m=128),    # forces 2 row-tiles + halo
        dict(B=1, C=128, H=16, W=16, max_tile_m=None),  # Cout>=128 (standard store)
    ]
    for cfg in configs:
        B, C, H, W = cfg["B"], cfg["C"], cfg["H"], cfg["W"]
        key, kx, kt, kw, kb = jax.random.split(key, 5)
        x = jax.random.normal(kx, (B, C, H, W), jnp.float32)          # NCHW
        t = jax.random.normal(kt, (B, 4 * C), jnp.float32)            # ignored
        fan_in = 9 * C
        w = jax.random.normal(kw, (3, 3, C, C), jnp.float32) / jnp.sqrt(float(fan_in))
        b = jax.random.normal(kb, (C,), jnp.float32) / jnp.sqrt(float(fan_in))

        out = downsample_forward(x, t, w, b, max_tile_m=cfg["max_tile_m"])
        out = jax.block_until_ready(out)
        ho = (H - 1) // 2 + 1
        wo = (W - 1) // 2 + 1
        assert out.shape == (B, C, ho, wo), (out.shape, (B, C, ho, wo))

        # Kernel feeds the MXU in bf16 (f32 accumulation) -> compare against the
        # f32 reference on bf16-rounded operands.
        xq = x.astype(jnp.bfloat16).astype(jnp.float32)
        wq = w.astype(jnp.bfloat16).astype(jnp.float32)
        ref = ref_conv(xq, wq, b)
        err = float(jnp.max(jnp.abs(out - ref)))
        assert jnp.allclose(out, ref, rtol=2e-2, atol=2e-2), (cfg, err)

    print("KERNEL_OK")
</pallas_src>

<mosaic_0001>
module attributes {stable_mosaic.version = 11 : i64} {
  func.func @_downsample_conv_kernel(%arg0: i32, %arg1: i32, %arg2: memref<1x8x9x8xbf16, #tpu.memory_space<vmem>>, %arg3: memref<1x8x9x8xbf16, #tpu.memory_space<vmem>>, %arg4: memref<1x8x9x8xbf16, #tpu.memory_space<vmem>>, %arg5: memref<1x8x9x8xbf16, #tpu.memory_space<vmem>>, %arg6: memref<1x1x9x8xbf16, #tpu.memory_space<vmem>>, %arg7: memref<1x1x9x8xbf16, #tpu.memory_space<vmem>>, %arg8: memref<9x8x8xbf16, #tpu.memory_space<vmem>>, %arg9: memref<1x8xf32, #tpu.memory_space<vmem>>, %arg10: memref<1x8x64xf32, #tpu.memory_space<vmem>>) attributes {dimension_semantics = [#tpu.dimension_semantics<parallel>, #tpu.dimension_semantics<parallel>], iteration_bounds = array<i64: 2, 1>, scalar_prefetch = 0 : i64, scratch_operands = 0 : i64, tpu.core_type = #tpu.core_type<tc>, window_params = [{transform_indices = @transform_0, window_bounds = array<i64: 1, 8, 9, 8>}, {transform_indices = @transform_1, window_bounds = array<i64: 1, 8, 9, 8>}, {transform_indices = @transform_2, window_bounds = array<i64: 1, 8, 9, 8>}, {transform_indices = @transform_3, window_bounds = array<i64: 1, 8, 9, 8>}, {transform_indices = @transform_4, window_bounds = array<i64: 1, 1, 9, 8>}, {transform_indices = @transform_5, window_bounds = array<i64: 1, 1, 9, 8>}, {pipeline_mode = #tpu.pipeline_mode<synchronous>, transform_indices = @transform_6, window_bounds = array<i64: 9, 8, 8>}, {pipeline_mode = #tpu.pipeline_mode<synchronous>, transform_indices = @transform_7, window_bounds = array<i64: 1, 8>}, {transform_indices = @transform_8, window_bounds = array<i64: 1, 8, 64>}]} {
    %c0 = arith.constant 0 : index
    %c0_0 = arith.constant 0 : index
    %c0_1 = arith.constant 0 : index
    %c0_2 = arith.constant 0 : index
    %0 = vector.load %arg2[%c0, %c0_0, %c0_1, %c0_2] : memref<1x8x9x8xbf16, #tpu.memory_space<vmem>>, vector<1x8x9x8xbf16>
    %1 = vector.shape_cast %0 : vector<1x8x9x8xbf16> to vector<8x9x8xbf16>
    %c0_3 = arith.constant 0 : index
    %c0_4 = arith.constant 0 : index
    %c0_5 = arith.constant 0 : index
    %c0_6 = arith.constant 0 : index
    %2 = vector.load %arg3[%c0_3, %c0_4, %c0_5, %c0_6] : memref<1x8x9x8xbf16, #tpu.memory_space<vmem>>, vector<1x8x9x8xbf16>
    %3 = vector.shape_cast %2 : vector<1x8x9x8xbf16> to vector<8x9x8xbf16>
    %c0_7 = arith.constant 0 : index
    %c0_8 = arith.constant 0 : index
    %c0_9 = arith.constant 0 : index
    %c0_10 = arith.constant 0 : index
    %4 = vector.load %arg4[%c0_7, %c0_8, %c0_9, %c0_10] : memref<1x8x9x8xbf16, #tpu.memory_space<vmem>>, vector<1x8x9x8xbf16>
    %5 = vector.shape_cast %4 : vector<1x8x9x8xbf16> to vector<8x9x8xbf16>
    %c0_11 = arith.constant 0 : index
    %c0_12 = arith.constant 0 : index
    %c0_13 = arith.constant 0 : index
    %c0_14 = arith.constant 0 : index
    %6 = vector.load %arg5[%c0_11, %c0_12, %c0_13, %c0_14] : memref<1x8x9x8xbf16, #tpu.memory_space<vmem>>, vector<1x8x9x8xbf16>
    %7 = vector.shape_cast %6 : vector<1x8x9x8xbf16> to vector<8x9x8xbf16>
    %c0_15 = arith.constant 0 : index
    %c0_16 = arith.constant 0 : index
    %c0_17 = arith.constant 0 : index
    %c0_18 = arith.constant 0 : index
    %8 = vector.load %arg6[%c0_15, %c0_16, %c0_17, %c0_18] : memref<1x1x9x8xbf16, #tpu.memory_space<vmem>>, vector<1x1x9x8xbf16>
    %9 = vector.shape_cast %8 : vector<1x1x9x8xbf16> to vector<1x9x8xbf16>
    %c0_19 = arith.constant 0 : index
    %c0_20 = arith.constant 0 : index
    %c0_21 = arith.constant 0 : index
    %c0_22 = arith.constant 0 : index
    %10 = vector.load %arg7[%c0_19, %c0_20, %c0_21, %c0_22] : memref<1x1x9x8xbf16, #tpu.memory_space<vmem>>, vector<1x1x9x8xbf16>
    %11 = vector.shape_cast %10 : vector<1x1x9x8xbf16> to vector<1x9x8xbf16>
    %12 = vector.extract_strided_slice %1 {offsets = [1, 0, 0], sizes = [7, 9, 8], strides = [1, 1, 1]} : vector<8x9x8xbf16> to vector<7x9x8xbf16>
    %13 = tpu.concatenate %12, %9 in 0 : vector<7x9x8xbf16>, vector<1x9x8xbf16> -> vector<8x9x8xbf16>
    %14 = vector.extract_strided_slice %3 {offsets = [1, 0, 0], sizes = [7, 9, 8], strides = [1, 1, 1]} : vector<8x9x8xbf16> to vector<7x9x8xbf16>
    %15 = tpu.concatenate %14, %11 in 0 : vector<7x9x8xbf16>, vector<1x9x8xbf16> -> vector<8x9x8xbf16>
    %16 = vector.extract_strided_slice %1 {offsets = [0, 0, 0], sizes = [8, 8, 8], strides = [1, 1, 1]} : vector<8x9x8xbf16> to vector<8x8x8xbf16>
    %17 = vector.shape_cast %16 : vector<8x8x8xbf16> to vector<64x8xbf16>
    %c0_23 = arith.constant 0 : index
    %c0_24 = arith.constant 0 : index
    %c0_25 = arith.constant 0 : index
    %18 = vector.load %arg8[%c0_23, %c0_24, %c0_25] : memref<9x8x8xbf16, #tpu.memory_space<vmem>>, vector<1x8x8xbf16>
    %19 = vector.shape_cast %18 : vector<1x8x8xbf16> to vector<8x8xbf16>
    %cst = arith.constant dense<0.000000e+00> : vector<64x8xf32>
    %20 = tpu.matmul %17, %19, %cst {dimension_numbers = #tpu.dot_dimension_numbers<[1], [0], [0], [1], [0, 0, 1, 1], [], []>} : vector<64x8xbf16>, vector<8x8xbf16>, vector<64x8xf32> -> vector<64x8xf32>
    %21 = vector.extract_strided_slice %3 {offsets = [0, 0, 0], sizes = [8, 8, 8], strides = [1, 1, 1]} : vector<8x9x8xbf16> to vector<8x8x8xbf16>
    %22 = vector.shape_cast %21 : vector<8x8x8xbf16> to vector<64x8xbf16>
    %c1 = arith.constant 1 : index
    %c0_26 = arith.constant 0 : index
    %c0_27 = arith.constant 0 : index
    %23 = vector.load %arg8[%c1, %c0_26, %c0_27] : memref<9x8x8xbf16, #tpu.memory_space<vmem>>, vector<1x8x8xbf16>
    %24 = vector.shape_cast %23 : vector<1x8x8xbf16> to vector<8x8xbf16>
    %cst_28 = arith.constant dense<0.000000e+00> : vector<64x8xf32>
    %25 = tpu.matmul %22, %24, %cst_28 {dimension_numbers = #tpu.dot_dimension_numbers<[1], [0], [0], [1], [0, 0, 1, 1], [], []>} : vector<64x8xbf16>, vector<8x8xbf16>, vector<64x8xf32> -> vector<64x8xf32>
    %26 = arith.addf %20, %25 : vector<64x8xf32>
    %27 = vector.extract_strided_slice %1 {offsets = [0, 1, 0], sizes = [8, 8, 8], strides = [1, 1, 1]} : vector<8x9x8xbf16> to vector<8x8x8xbf16>
    %28 = vector.shape_cast %27 : vector<8x8x8xbf16> to vector<64x8xbf16>
    %c2 = arith.constant 2 : index
    %c0_29 = arith.constant 0 : index
    %c0_30 = arith.constant 0 : index
    %29 = vector.load %arg8[%c2, %c0_29, %c0_30] : memref<9x8x8xbf16, #tpu.memory_space<vmem>>, vector<1x8x8xbf16>
    %30 = vector.shape_cast %29 : vector<1x8x8xbf16> to vector<8x8xbf16>
    %cst_31 = arith.constant dense<0.000000e+00> : vector<64x8xf32>
    %31 = tpu.matmul %28, %30, %cst_31 {dimension_numbers = #tpu.dot_dimension_numbers<[1], [0], [0], [1], [0, 0, 1, 1], [], []>} : vector<64x8xbf16>, vector<8x8xbf16>, vector<64x8xf32> -> vector<64x8xf32>
    %32 = arith.addf %26, %31 : vector<64x8xf32>
    %33 = vector.extract_strided_slice %5 {offsets = [0, 0, 0], sizes = [8, 8, 8], strides = [1, 1, 1]} : vector<8x9x8xbf16> to vector<8x8x8xbf16>
    %34 = vector.shape_cast %33 : vector<8x8x8xbf16> to vector<64x8xbf16>
    %c3 = arith.constant 3 : index
    %c0_32 = arith.constant 0 : index
    %c0_33 = arith.constant 0 : index
    %35 = vector.load %arg8[%c3, %c0_32, %c0_33] : memref<9x8x8xbf16, #tpu.memory_space<vmem>>, vector<1x8x8xbf16>
    %36 = vector.shape_cast %35 : vector<1x8x8xbf16> to vector<8x8xbf16>
    %cst_34 = arith.constant dense<0.000000e+00> : vector<64x8xf32>
    %37 = tpu.matmul %34, %36, %cst_34 {dimension_numbers = #tpu.dot_dimension_numbers<[1], [0], [0], [1], [0, 0, 1, 1], [], []>} : vector<64x8xbf16>, vector<8x8xbf16>, vector<64x8xf32> -> vector<64x8xf32>
    %38 = arith.addf %32, %37 : vector<64x8xf32>
    %39 = vector.extract_strided_slice %7 {offsets = [0, 0, 0], sizes = [8, 8, 8], strides = [1, 1, 1]} : vector<8x9x8xbf16> to vector<8x8x8xbf16>
    %40 = vector.shape_cast %39 : vector<8x8x8xbf16> to vector<64x8xbf16>
    %c4 = arith.constant 4 : index
    %c0_35 = arith.constant 0 : index
    %c0_36 = arith.constant 0 : index
    %41 = vector.load %arg8[%c4, %c0_35, %c0_36] : memref<9x8x8xbf16, #tpu.memory_space<vmem>>, vector<1x8x8xbf16>
    %42 = vector.shape_cast %41 : vector<1x8x8xbf16> to vector<8x8xbf16>
    %cst_37 = arith.constant dense<0.000000e+00> : vector<64x8xf32>
    %43 = tpu.matmul %40, %42, %cst_37 {dimension_numbers = #tpu.dot_dimension_numbers<[1], [0], [0], [1], [0, 0, 1, 1], [], []>} : vector<64x8xbf16>, vector<8x8xbf16>, vector<64x8xf32> -> vector<64x8xf32>
    %44 = arith.addf %38, %43 : vector<64x8xf32>
    %45 = vector.extract_strided_slice %5 {offsets = [0, 1, 0], sizes = [8, 8, 8], strides = [1, 1, 1]} : vector<8x9x8xbf16> to vector<8x8x8xbf16>
    %46 = vector.shape_cast %45 : vector<8x8x8xbf16> to vector<64x8xbf16>
    %c5 = arith.constant 5 : index
    %c0_38 = arith.constant 0 : index
    %c0_39 = arith.constant 0 : index
    %47 = vector.load %arg8[%c5, %c0_38, %c0_39] : memref<9x8x8xbf16, #tpu.memory_space<vmem>>, vector<1x8x8xbf16>
    %48 = vector.shape_cast %47 : vector<1x8x8xbf16> to vector<8x8xbf16>
    %cst_40 = arith.constant dense<0.000000e+00> : vector<64x8xf32>
    %49 = tpu.matmul %46, %48, %cst_40 {dimension_numbers = #tpu.dot_dimension_numbers<[1], [0], [0], [1], [0, 0, 1, 1], [], []>} : vector<64x8xbf16>, vector<8x8xbf16>, vector<64x8xf32> -> vector<64x8xf32>
    %50 = arith.addf %44, %49 : vector<64x8xf32>
    %51 = vector.extract_strided_slice %13 {offsets = [0, 0, 0], sizes = [8, 8, 8], strides = [1, 1, 1]} : vector<8x9x8xbf16> to vector<8x8x8xbf16>
    %52 = vector.shape_cast %51 : vector<8x8x8xbf16> to vector<64x8xbf16>
    %c6 = arith.constant 6 : index
    %c0_41 = arith.constant 0 : index
    %c0_42 = arith.constant 0 : index
    %53 = vector.load %arg8[%c6, %c0_41, %c0_42] : memref<9x8x8xbf16, #tpu.memory_space<vmem>>, vector<1x8x8xbf16>
    %54 = vector.shape_cast %53 : vector<1x8x8xbf16> to vector<8x8xbf16>
    %cst_43 = arith.constant dense<0.000000e+00> : vector<64x8xf32>
    %55 = tpu.matmul %52, %54, %cst_43 {dimension_numbers = #tpu.dot_dimension_numbers<[1], [0], [0], [1], [0, 0, 1, 1], [], []>} : vector<64x8xbf16>, vector<8x8xbf16>, vector<64x8xf32> -> vector<64x8xf32>
    %56 = arith.addf %50, %55 : vector<64x8xf32>
    %57 = vector.extract_strided_slice %15 {offsets = [0, 0, 0], sizes = [8, 8, 8], strides = [1, 1, 1]} : vector<8x9x8xbf16> to vector<8x8x8xbf16>
    %58 = vector.shape_cast %57 : vector<8x8x8xbf16> to vector<64x8xbf16>
    %c7 = arith.constant 7 : index
    %c0_44 = arith.constant 0 : index
    %c0_45 = arith.constant 0 : index
    %59 = vector.load %arg8[%c7, %c0_44, %c0_45] : memref<9x8x8xbf16, #tpu.memory_space<vmem>>, vector<1x8x8xbf16>
    %60 = vector.shape_cast %59 : vector<1x8x8xbf16> to vector<8x8xbf16>
    %cst_46 = arith.constant dense<0.000000e+00> : vector<64x8xf32>
    %61 = tpu.matmul %58, %60, %cst_46 {dimension_numbers = #tpu.dot_dimension_numbers<[1], [0], [0], [1], [0, 0, 1, 1], [], []>} : vector<64x8xbf16>, vector<8x8xbf16>, vector<64x8xf32> -> vector<64x8xf32>
    %62 = arith.addf %56, %61 : vector<64x8xf32>
    %63 = vector.extract_strided_slice %13 {offsets = [0, 1, 0], sizes = [8, 8, 8], strides = [1, 1, 1]} : vector<8x9x8xbf16> to vector<8x8x8xbf16>
    %64 = vector.shape_cast %63 : vector<8x8x8xbf16> to vector<64x8xbf16>
    %c8 = arith.constant 8 : index
    %c0_47 = arith.constant 0 : index
    %c0_48 = arith.constant 0 : index
    %65 = vector.load %arg8[%c8, %c0_47, %c0_48] : memref<9x8x8xbf16, #tpu.memory_space<vmem>>, vector<1x8x8xbf16>
    %66 = vector.shape_cast %65 : vector<1x8x8xbf16> to vector<8x8xbf16>
    %cst_49 = arith.constant dense<0.000000e+00> : vector<64x8xf32>
    %67 = tpu.matmul %64, %66, %cst_49 {dimension_numbers = #tpu.dot_dimension_numbers<[1], [0], [0], [1], [0, 0, 1, 1], [], []>} : vector<64x8xbf16>, vector<8x8xbf16>, vector<64x8xf32> -> vector<64x8xf32>
    %68 = arith.addf %62, %67 : vector<64x8xf32>
    %c0_50 = arith.constant 0 : index
    %c0_51 = arith.constant 0 : index
    %69 = vector.load %arg9[%c0_50, %c0_51] : memref<1x8xf32, #tpu.memory_space<vmem>>, vector<1x8xf32>
    %70 = vector.broadcast %69 : vector<1x8xf32> to vector<64x8xf32>
    %71 = arith.addf %68, %70 : vector<64x8xf32>
    %72 = tpu.transpose %71, [1, 0] : vector<64x8xf32> -> vector<8x64xf32>
    %c0_52 = arith.constant 0 : index
    %c0_53 = arith.constant 0 : index
    %c0_54 = arith.constant 0 : index
    %73 = vector.load %arg10[%c0_52, %c0_53, %c0_54] : memref<1x8x64xf32, #tpu.memory_space<vmem>>, vector<1x8x64xf32>
    %74 = vector.shape_cast %73 : vector<1x8x64xf32> to vector<8x64xf32>
    %75 = vector.shape_cast %72 : vector<8x64xf32> to vector<1x8x64xf32>
    tpu.vector_store %arg10[%c0_52, %c0_53, %c0_54], %75 {strides = array<i32>} : memref<1x8x64xf32, #tpu.memory_space<vmem>>, vector<1x8x64xf32>,
    return
  }
  func.func @transform_0(%arg0: i32, %arg1: i32) -> (i32, i32, i32, i32) {
    %c0_i32 = arith.constant 0 : i32
    %c0_i32_0 = arith.constant 0 : i32
    %c0_i32_1 = arith.constant 0 : i32
    return %arg0, %arg1, %c0_i32, %c0_i32_0 : i32, i32, i32, i32
  }
  func.func @transform_1(%arg0: i32, %arg1: i32) -> (i32, i32, i32, i32) {
    %c0_i32 = arith.constant 0 : i32
    %c0_i32_0 = arith.constant 0 : i32
    %c0_i32_1 = arith.constant 0 : i32
    return %arg0, %arg1, %c0_i32, %c0_i32_0 : i32, i32, i32, i32
  }
  func.func @transform_2(%arg0: i32, %arg1: i32) -> (i32, i32, i32, i32) {
    %c0_i32 = arith.constant 0 : i32
    %c0_i32_0 = arith.constant 0 : i32
    %c0_i32_1 = arith.constant 0 : i32
    return %arg0, %arg1, %c0_i32, %c0_i32_0 : i32, i32, i32, i32
  }
  func.func @transform_3(%arg0: i32, %arg1: i32) -> (i32, i32, i32, i32) {
    %c0_i32 = arith.constant 0 : i32
    %c0_i32_0 = arith.constant 0 : i32
    %c0_i32_1 = arith.constant 0 : i32
    return %arg0, %arg1, %c0_i32, %c0_i32_0 : i32, i32, i32, i32
  }
  func.func @transform_4(%arg0: i32, %arg1: i32) -> (i32, i32, i32, i32) {
    %c0_i32 = arith.constant 0 : i32
    %c0_i32_0 = arith.constant 0 : i32
    %c0_i32_1 = arith.constant 0 : i32
    return %arg0, %arg1, %c0_i32, %c0_i32_0 : i32, i32, i32, i32
  }
  func.func @transform_5(%arg0: i32, %arg1: i32) -> (i32, i32, i32, i32) {
    %c0_i32 = arith.constant 0 : i32
    %c0_i32_0 = arith.constant 0 : i32
    %c0_i32_1 = arith.constant 0 : i32
    return %arg0, %arg1, %c0_i32, %c0_i32_0 : i32, i32, i32, i32
  }
  func.func @transform_6(%arg0: i32, %arg1: i32) -> (i32, i32, i32) {
    %c0_i32 = arith.constant 0 : i32
    %c0_i32_0 = arith.constant 0 : i32
    %c0_i32_1 = arith.constant 0 : i32
    %c0_i32_2 = arith.constant 0 : i32
    return %c0_i32, %c0_i32_0, %c0_i32_1 : i32, i32, i32
  }
  func.func @transform_7(%arg0: i32, %arg1: i32) -> (i32, i32) {
    %c0_i32 = arith.constant 0 : i32
    %c0_i32_0 = arith.constant 0 : i32
    %c0_i32_1 = arith.constant 0 : i32
    return %c0_i32, %c0_i32_0 : i32, i32
  }
  func.func @transform_8(%arg0: i32, %arg1: i32) -> (i32, i32, i32) {
    %c0_i32 = arith.constant 0 : i32
    %c0_i32_0 = arith.constant 0 : i32
    return %arg0, %c0_i32, %arg1 : i32, i32, i32
  }
}

</mosaic_0001>

<llo_original>
// kernel: tpu_custom_call.1
$region0: #{tpu_custom_call.1}
  #allocation0 [shape = 'u32[]', space=smem, size = 0x4, offset = 0x4, fixed_abs, tag = 'smem constant byte address 0x4 - core index']
  #allocation1 [shape = 'u32[72,128]{1,0:T(1,128)}', space=vmem, size = 0x9000, scoped, tag = 'internal scratch']
  %s0 = inlined_call_operand.vmem [shape: bf16[2,9,9,8], index: 0, kind: input, shape index: {}]
  %s1 = inlined_call_operand.vmem [shape: bf16[2,9,9,8], index: 1, kind: input, shape index: {}]
  %s2 = inlined_call_operand.vmem [shape: bf16[2,9,9,8], index: 2, kind: input, shape index: {}]
  %s3 = inlined_call_operand.vmem [shape: bf16[2,9,9,8], index: 3, kind: input, shape index: {}]
  %s4 = inlined_call_operand.vmem [shape: bf16[2,1,9,8], index: 4, kind: input, shape index: {}]
  %s5 = inlined_call_operand.vmem [shape: bf16[2,1,9,8], index: 5, kind: input, shape index: {}]
  %s6 = inlined_call_operand.vmem [shape: bf16[9,8,8], index: 6, kind: input, shape index: {}]
  %s7 = inlined_call_operand.vmem [shape: f32[1,8], index: 7, kind: input, shape index: {}]
  %s8 = inlined_call_operand.hbm [shape: f32[2,8,64], index: 8, kind: output, shape index: {}]
  %s9 = sld [smem:[#allocation0]]
  $region65: #{tpu_custom_call.1} parent=0
    _
  %s11 = ssub.s32 1, %s9
  %s12 = scalar_select 0, %s11, %s9
  $region1: #{tpu_custom_call.1} parent=0
    #allocation2 [shape = 'u8[8192]{0}', space=vmem, size = 0x2000, scoped, tag = 'output window, operand 0']
    #allocation3 [shape = 's32[2]{0}', space=sflag, size = 0x8, scoped, tag = 'scoped memory for tpu_custom_call.1']
    %13 = vsyncpa [#allocation3], 0
    %s14 = scalar_lea.sflag [#allocation3], 1
    %15 = vsyncpa %s14, 0
    loop: start=0, step=1, limit=4
    $region2: #{tpu_custom_call.1} parent=1 // loop_pre_header
      _
    $region3: #{tpu_custom_call.1} parent=1 // loop_header
      %s17 = sphi 0, %s21
      %p18 = scmp.ge.s32.totalorder %s17, 4
      %s24 = sphi 0, %s36
      %s25 = sphi 0, %s32
      %s26 = sphi 0, %s24
      %s27 = sphi 0, %s25
      %s28 = sphi 0, %s26
      %s29 = sphi 0, %s27
      %s41 = sphi 0, %s43
      %s44 = sphi 0, %s41
      %s45 = sphi 0, %s44
      %s61 = sphi 0, %s45
      %s69 = sphi 0, %s71
      %s72 = sphi 0, %s69
      %s73 = sphi 0, %s72
      %s89 = sphi 0, %s73
      %s97 = sphi 0, %s99
      %s100 = sphi 0, %s97
      %s101 = sphi 0, %s100
      %s117 = sphi 0, %s101
      %s125 = sphi 0, %s127
      %s128 = sphi 0, %s125
      %s129 = sphi 0, %s128
      %s145 = sphi 0, %s129
      %s153 = sphi 0, %s155
      %s156 = sphi 0, %s153
      %s157 = sphi 0, %s156
      %s173 = sphi 0, %s157
      %s181 = sphi 0, %s183
      %s184 = sphi 0, %s181
      %s185 = sphi 0, %s184
      %s201 = sphi 0, %s185
      %s205 = sphi 0, %s205
      %s207 = sphi 0, %s205
      %s208 = sphi 0, %s207
      %s222 = sphi 0, %s208
      %s226 = sphi 0, %s226
      %s228 = sphi 0, %s226
      %s229 = sphi 0, %s228
      %s243 = sphi 0, %s229
      %s251 = sphi 0, %s253
      %s254 = sphi 0, %s251
      %s255 = sphi 0, %s254
      %s271 = sphi 0, %s255
    $region4: #{tpu_custom_call.1} parent=1 // loop_header_branch
      %20 = sbr.rel (%p18) target = $region8
    $region5: #{tpu_custom_call.1} parent=1 // loop_body
      %s22 = ssub.s32 %s17, 1
      %s23 = ssub.s32 %s17, 2
      %s30 = sadd.s32 1, %s25
      %p31 = scmp.ge.s32.totalorder %s30, 1
      %s32 = scalar_select %p31, 0, %s30
      %s33 = sadd.s32 1, %s24
      %s34 = scalar_select %p31, %s33, %s24
      %p35 = scmp.ge.s32.totalorder %s34, 2
      %s36 = scalar_select %p35, 0, %s34
      %s37 = ssub.s32 %s24, %s36
      %s38 = ssub.s32 %s25, %s32
      %s39 = sor.u32 %s37, %s38
      %p40 = scmp.eq.s32.totalorder %s39, 0
      %s42 = sadd.s32 %s41, 1
      %s43 = scalar_select %p40, %s41, %s42
      %p46 = pneg %p40
      %p47 = scmp.eq.s32.totalorder %s17, 1
      %p48 = por %p46, %p47
      %p49 = scmp.ne.s32.totalorder %s41, %s44
      %p50 = scmp.eq.s32.totalorder %s17, 0
      %p51 = por %p49, %p50
      %p52 = scmp.ne.s32.totalorder %s41, %s44
      %p53 = scmp.eq.s32.totalorder %s22, 1
      %p54 = por %p52, %p53
      %p55 = scmp.ne.s32.totalorder %s44, %s45
      %p56 = scmp.eq.s32.totalorder %s22, 0
      %p57 = por %p55, %p56
      %p58 = scmp.ne.s32.totalorder %s44, %s45
      %p59 = scmp.eq.s32.totalorder %s23, 1
      %p60 = por %p58, %p59
      %p62 = scmp.ne.s32.totalorder %s45, %s61
      %p63 = scmp.eq.s32.totalorder %s23, 0
      %p64 = por %p62, %p63
      %s65 = ssub.s32 %s24, %s36
      %s66 = ssub.s32 %s25, %s32
      %s67 = sor.u32 %s65, %s66
      %p68 = scmp.eq.s32.totalorder %s67, 0
      %s70 = sadd.s32 %s69, 1
      %s71 = scalar_select %p68, %s69, %s70
      %p74 = pneg %p68
      %p75 = scmp.eq.s32.totalorder %s17, 1
      %p76 = por %p74, %p75
      %p77 = scmp.ne.s32.totalorder %s69, %s72
      %p78 = scmp.eq.s32.totalorder %s17, 0
      %p79 = por %p77, %p78
      %p80 = scmp.ne.s32.totalorder %s69, %s72
      %p81 = scmp.eq.s32.totalorder %s22, 1
      %p82 = por %p80, %p81
      %p83 = scmp.ne.s32.totalorder %s72, %s73
      %p84 = scmp.eq.s32.totalorder %s22, 0
      %p85 = por %p83, %p84
      %p86 = scmp.ne.s32.totalorder %s72, %s73
      %p87 = scmp.eq.s32.totalorder %s23, 1
      %p88 = por %p86, %p87
      %p90 = scmp.ne.s32.totalorder %s73, %s89
      %p91 = scmp.eq.s32.totalorder %s23, 0
      %p92 = por %p90, %p91
      %s93 = ssub.s32 %s24, %s36
      %s94 = ssub.s32 %s25, %s32
      %s95 = sor.u32 %s93, %s94
      %p96 = scmp.eq.s32.totalorder %s95, 0
      %s98 = sadd.s32 %s97, 1
      %s99 = scalar_select %p96, %s97, %s98
      %p102 = pneg %p96
      %p103 = scmp.eq.s32.totalorder %s17, 1
      %p104 = por %p102, %p103
      %p105 = scmp.ne.s32.totalorder %s97, %s100
      %p106 = scmp.eq.s32.totalorder %s17, 0
      %p107 = por %p105, %p106
      %p108 = scmp.ne.s32.totalorder %s97, %s100
      %p109 = scmp.eq.s32.totalorder %s22, 1
      %p110 = por %p108, %p109
      %p111 = scmp.ne.s32.totalorder %s100, %s101
      %p112 = scmp.eq.s32.totalorder %s22, 0
      %p113 = por %p111, %p112
      %p114 = scmp.ne.s32.totalorder %s100, %s101
      %p115 = scmp.eq.s32.totalorder %s23, 1
      %p116 = por %p114, %p115
      %p118 = scmp.ne.s32.totalorder %s101, %s117
      %p119 = scmp.eq.s32.totalorder %s23, 0
      %p120 = por %p118, %p119
      %s121 = ssub.s32 %s24, %s36
      %s122 = ssub.s32 %s25, %s32
      %s123 = sor.u32 %s121, %s122
      %p124 = scmp.eq.s32.totalorder %s123, 0
      %s126 = sadd.s32 %s125, 1
      %s127 = scalar_select %p124, %s125, %s126
      %p130 = pneg %p124
      %p131 = scmp.eq.s32.totalorder %s17, 1
      %p132 = por %p130, %p131
      %p133 = scmp.ne.s32.totalorder %s125, %s128
      %p134 = scmp.eq.s32.totalorder %s17, 0
      %p135 = por %p133, %p134
      %p136 = scmp.ne.s32.totalorder %s125, %s128
      %p137 = scmp.eq.s32.totalorder %s22, 1
      %p138 = por %p136, %p137
      %p139 = scmp.ne.s32.totalorder %s128, %s129
      %p140 = scmp.eq.s32.totalorder %s22, 0
      %p141 = por %p139, %p140
      %p142 = scmp.ne.s32.totalorder %s128, %s129
      %p143 = scmp.eq.s32.totalorder %s23, 1
      %p144 = por %p142, %p143
      %p146 = scmp.ne.s32.totalorder %s129, %s145
      %p147 = scmp.eq.s32.totalorder %s23, 0
      %p148 = por %p146, %p147
      %s149 = ssub.s32 %s24, %s36
      %s150 = ssub.s32 %s25, %s32
      %s151 = sor.u32 %s149, %s150
      %p152 = scmp.eq.s32.totalorder %s151, 0
      %s154 = sadd.s32 %s153, 1
      %s155 = scalar_select %p152, %s153, %s154
      %p158 = pneg %p152
      %p159 = scmp.eq.s32.totalorder %s17, 1
      %p160 = por %p158, %p159
      %p161 = scmp.ne.s32.totalorder %s153, %s156
      %p162 = scmp.eq.s32.totalorder %s17, 0
      %p163 = por %p161, %p162
      %p164 = scmp.ne.s32.totalorder %s153, %s156
      %p165 = scmp.eq.s32.totalorder %s22, 1
      %p166 = por %p164, %p165
      %p167 = scmp.ne.s32.totalorder %s156, %s157
      %p168 = scmp.eq.s32.totalorder %s22, 0
      %p169 = por %p167, %p168
      %p170 = scmp.ne.s32.totalorder %s156, %s157
      %p171 = scmp.eq.s32.totalorder %s23, 1
      %p172 = por %p170, %p171
      %p174 = scmp.ne.s32.totalorder %s157, %s173
      %p175 = scmp.eq.s32.totalorder %s23, 0
      %p176 = por %p174, %p175
      %s177 = ssub.s32 %s24, %s36
      %s178 = ssub.s32 %s25, %s32
      %s179 = sor.u32 %s177, %s178
      %p180 = scmp.eq.s32.totalorder %s179, 0
      %s182 = sadd.s32 %s181, 1
      %s183 = scalar_select %p180, %s181, %s182
      %p186 = pneg %p180
      %p187 = scmp.eq.s32.totalorder %s17, 1
      %p188 = por %p186, %p187
      %p189 = scmp.ne.s32.totalorder %s181, %s184
      %p190 = scmp.eq.s32.totalorder %s17, 0
      %p191 = por %p189, %p190
      %p192 = scmp.ne.s32.totalorder %s181, %s184
      %p193 = scmp.eq.s32.totalorder %s22, 1
      %p194 = por %p192, %p193
      %p195 = scmp.ne.s32.totalorder %s184, %s185
      %p196 = scmp.eq.s32.totalorder %s22, 0
      %p197 = por %p195, %p196
      %p198 = scmp.ne.s32.totalorder %s184, %s185
      %p199 = scmp.eq.s32.totalorder %s23, 1
      %p200 = por %p198, %p199
      %p202 = scmp.ne.s32.totalorder %s185, %s201
      %p203 = scmp.eq.s32.totalorder %s23, 0
      %p204 = por %p202, %p203
      %s206 = sadd.s32 %s205, 1
      %p209 = scmp.eq.s32.totalorder %s17, 1
      %p210 = scmp.ne.s32.totalorder %s205, %s207
      %p211 = scmp.eq.s32.totalorder %s17, 0
      %p212 = por %p210, %p211
      %p213 = scmp.ne.s32.totalorder %s205, %s207
      %p214 = scmp.eq.s32.totalorder %s22, 1
      %p215 = por %p213, %p214
      %p216 = scmp.ne.s32.totalorder %s207, %s208
      %p217 = scmp.eq.s32.totalorder %s22, 0
      %p218 = por %p216, %p217
      %p219 = scmp.ne.s32.totalorder %s207, %s208
      %p220 = scmp.eq.s32.totalorder %s23, 1
      %p221 = por %p219, %p220
      %p223 = scmp.ne.s32.totalorder %s208, %s222
      %p224 = scmp.eq.s32.totalorder %s23, 0
      %p225 = por %p223, %p224
      %s227 = sadd.s32 %s226, 1
      %p230 = scmp.eq.s32.totalorder %s17, 1
      %p231 = scmp.ne.s32.totalorder %s226, %s228
      %p232 = scmp.eq.s32.totalorder %s17, 0
      %p233 = por %p231, %p232
      %p234 = scmp.ne.s32.totalorder %s226, %s228
      %p235 = scmp.eq.s32.totalorder %s22, 1
      %p236 = por %p234, %p235
      %p237 = scmp.ne.s32.totalorder %s228, %s229
      %p238 = scmp.eq.s32.totalorder %s22, 0
      %p239 = por %p237, %p238
      %p240 = scmp.ne.s32.totalorder %s228, %s229
      %p241 = scmp.eq.s32.totalorder %s23, 1
      %p242 = por %p240, %p241
      %p244 = scmp.ne.s32.totalorder %s229, %s243
      %p245 = scmp.eq.s32.totalorder %s23, 0
      %p246 = por %p244, %p245
      %s247 = ssub.s32 %s24, %s36
      %s248 = ssub.s32 %s25, %s32
      %s249 = sor.u32 %s247, %s248
      %p250 = scmp.eq.s32.totalorder %s249, 0
      %s252 = sadd.s32 %s251, 1
      %s253 = scalar_select %p250, %s251, %s252
      %p256 = pneg %p250
      %p257 = scmp.eq.s32.totalorder %s17, 1
      %p258 = por %p256, %p257
      %p259 = scmp.ne.s32.totalorder %s251, %s254
      %p260 = scmp.eq.s32.totalorder %s17, 0
      %p261 = por %p259, %p260
      %p262 = scmp.ne.s32.totalorder %s251, %s254
      %p263 = scmp.eq.s32.totalorder %s22, 1
      %p264 = por %p262, %p263
      %p265 = scmp.ne.s32.totalorder %s254, %s255
      %p266 = scmp.eq.s32.totalorder %s22, 0
      %p267 = por %p265, %p266
      %p268 = scmp.ne.s32.totalorder %s254, %s255
      %p269 = scmp.eq.s32.totalorder %s23, 1
      %p270 = por %p268, %p269
      %p272 = scmp.ne.s32.totalorder %s255, %s271
      %p273 = scmp.eq.s32.totalorder %s23, 0
      %p274 = por %p272, %p273
      %p275 = scmp.le.s32.totalorder 1, %s17
      %p276 = scmp.lt.s32.totalorder %s17, 3
      %p277 = pnand %p275, %p276
      %p278 = pneg %p277
      // Predicated region
      $region9: #{tpu_custom_call.1} parent=5 // pred_check
        _
      $region10: #{tpu_custom_call.1} parent=5 // pred_check_branch
        %280 = sbr.rel (%p277) target = $region12
      $region11: #{tpu_custom_call.1} parent=5 // pred_region
        %s281 = ssub.s32 %s17, 1
        // Predicated region
        $region13: #{tpu_custom_call.1} parent=11 // pred_check
          %p282 = pneg %p218
        $region14: #{tpu_custom_call.1} parent=11 // pred_check_branch
          %284 = sbr.rel (%p282) target = $region16
        $region15: #{tpu_custom_call.1} parent=11 // pred_region
          _
        $region16: #{tpu_custom_call.1} parent=11 // pred_fallthru
          _
        // Predicated region
        $region17: #{tpu_custom_call.1} parent=11 // pred_check
          %p285 = pneg %p239
        $region18: #{tpu_custom_call.1} parent=11 // pred_check_branch
          %287 = sbr.rel (%p285) target = $region20
        $region19: #{tpu_custom_call.1} parent=11 // pred_region
          _
        $region20: #{tpu_custom_call.1} parent=11 // pred_fallthru
          _
      $region12: #{tpu_custom_call.1} parent=5 // pred_fallthru
        _
      %p288 = scmp.lt.s32.totalorder %s17, 2
      // Predicated region
      $region21: #{tpu_custom_call.1} parent=5 // pred_check
        %p289 = pneg %p288
      $region22: #{tpu_custom_call.1} parent=5 // pred_check_branch
        %291 = sbr.rel (%p289) target = $region24
      $region23: #{tpu_custom_call.1} parent=5 // pred_region
        // Predicated region
        $region25: #{tpu_custom_call.1} parent=23 // pred_check
          %p292 = pneg %p51
        $region26: #{tpu_custom_call.1} parent=23 // pred_check_branch
          %294 = sbr.rel (%p292) target = $region28
        $region27: #{tpu_custom_call.1} parent=23 // pred_region
          %s295 = smul.u32 8, %s25
          %s296 = ssub.s32 9, %s295
          %p297 = scmp.lt.s32.totalorder %s296, 8
          %s298 = scalar_select %p297, %s296, 8
          %s299 = smul.u32 4, %s298
          %s300 = smul.u32 %s299, 2
          %p301 = scmp.lt.s32.totalorder %s24, 1
          %s302 = scalar_select %p301, %s24, 1
          %p303 = scmp.lt.s32.totalorder %s295, 8
          %s304 = scalar_select %p303, %s295, 8
          %s305 = smul.addr %s304, 2
          %s306 = smul.addr %s302, 18
          %s307 = sadd.s32 %s305, %s306
          %s308 = smul.addr %s307, 4
          %s309 = scalar_lea.vmem %s0, %s308
          %s310 = smul.u32 8, %s25
          %s311 = ssub.s32 9, %s310
          %p312 = scmp.lt.s32.totalorder %s311, 8
          %s313 = scalar_select %p312, %s311, 8
          %s314 = smul.u32 4, %s313
          %s315 = smul.u32 %s314, 2
        $region28: #{tpu_custom_call.1} parent=23 // pred_fallthru
          _
        // Predicated region
        $region29: #{tpu_custom_call.1} parent=23 // pred_check
          %p316 = pneg %p79
        $region30: #{tpu_custom_call.1} parent=23 // pred_check_branch
          %318 = sbr.rel (%p316) target = $region32
        $region31: #{tpu_custom_call.1} parent=23 // pred_region
          %s319 = smul.u32 8, %s25
          %s320 = ssub.s32 9, %s319
          %p321 = scmp.lt.s32.totalorder %s320, 8
          %s322 = scalar_select %p321, %s320, 8
          %s323 = smul.u32 4, %s322
          %s324 = smul.u32 %s323, 2
          %p325 = scmp.lt.s32.totalorder %s24, 1
          %s326 = scalar_select %p325, %s24, 1
          %p327 = scmp.lt.s32.totalorder %s319, 8
          %s328 = scalar_select %p327, %s319, 8
          %s329 = smul.addr %s328, 2
          %s330 = smul.addr %s326, 18
          %s331 = sadd.s32 %s329, %s330
          %s332 = smul.addr %s331, 4
          %s333 = scalar_lea.vmem %s1, %s332
          %s334 = smul.u32 8, %s25
          %s335 = ssub.s32 9, %s334
          %p336 = scmp.lt.s32.totalorder %s335, 8
          %s337 = scalar_select %p336, %s335, 8
          %s338 = smul.u32 4, %s337
          %s339 = smul.u32 %s338, 2
        $region32: #{tpu_custom_call.1} parent=23 // pred_fallthru
          _
        // Predicated region
        $region33: #{tpu_custom_call.1} parent=23 // pred_check
          %p340 = pneg %p107
        $region34: #{tpu_custom_call.1} parent=23 // pred_check_branch
          %342 = sbr.rel (%p340) target = $region36
        $region35: #{tpu_custom_call.1} parent=23 // pred_region
          %s343 = smul.u32 8, %s25
          %s344 = ssub.s32 9, %s343
          %p345 = scmp.lt.s32.totalorder %s344, 8
          %s346 = scalar_select %p345, %s344, 8
          %s347 = smul.u32 4, %s346
          %s348 = smul.u32 %s347, 2
          %p349 = scmp.lt.s32.totalorder %s24, 1
          %s350 = scalar_select %p349, %s24, 1
          %p351 = scmp.lt.s32.totalorder %s343, 8
          %s352 = scalar_select %p351, %s343, 8
          %s353 = smul.addr %s352, 2
          %s354 = smul.addr %s350, 18
          %s355 = sadd.s32 %s353, %s354
          %s356 = smul.addr %s355, 4
          %s357 = scalar_lea.vmem %s2, %s356
          %s358 = smul.u32 8, %s25
          %s359 = ssub.s32 9, %s358
          %p360 = scmp.lt.s32.totalorder %s359, 8
          %s361 = scalar_select %p360, %s359, 8
          %s362 = smul.u32 4, %s361
          %s363 = smul.u32 %s362, 2
        $region36: #{tpu_custom_call.1} parent=23 // pred_fallthru
          _
        // Predicated region
        $region37: #{tpu_custom_call.1} parent=23 // pred_check
          %p364 = pneg %p135
        $region38: #{tpu_custom_call.1} parent=23 // pred_check_branch
          %366 = sbr.rel (%p364) target = $region40
        $region39: #{tpu_custom_call.1} parent=23 // pred_region
          %s367 = smul.u32 8, %s25
          %s368 = ssub.s32 9, %s367
          %p369 = scmp.lt.s32.totalorder %s368, 8
          %s370 = scalar_select %p369, %s368, 8
          %s371 = smul.u32 4, %s370
          %s372 = smul.u32 %s371, 2
          %p373 = scmp.lt.s32.totalorder %s24, 1
          %s374 = scalar_select %p373, %s24, 1
          %p375 = scmp.lt.s32.totalorder %s367, 8
          %s376 = scalar_select %p375, %s367, 8
          %s377 = smul.addr %s376, 2
          %s378 = smul.addr %s374, 18
          %s379 = sadd.s32 %s377, %s378
          %s380 = smul.addr %s379, 4
          %s381 = scalar_lea.vmem %s3, %s380
          %s382 = smul.u32 8, %s25
          %s383 = ssub.s32 9, %s382
          %p384 = scmp.lt.s32.totalorder %s383, 8
          %s385 = scalar_select %p384, %s383, 8
          %s386 = smul.u32 4, %s385
          %s387 = smul.u32 %s386, 2
        $region40: #{tpu_custom_call.1} parent=23 // pred_fallthru
          _
        // Predicated region
        $region41: #{tpu_custom_call.1} parent=23 // pred_check
          %p388 = pneg %p163
        $region42: #{tpu_custom_call.1} parent=23 // pred_check_branch
          %390 = sbr.rel (%p388) target = $region44
        $region43: #{tpu_custom_call.1} parent=23 // pred_region
          %p391 = scmp.lt.s32.totalorder %s24, 1
          %s392 = scalar_select %p391, %s24, 1
          %p393 = scmp.lt.s32.totalorder %s25, 0
          %s394 = scalar_select %p393, %s25, 0
          %s395 = smul.addr %s394, 2
          %s396 = smul.addr %s392, 2
          %s397 = sadd.s32 %s395, %s396
          %s398 = smul.addr %s397, 4
          %s399 = scalar_lea.vmem %s4, %s398
        $region44: #{tpu_custom_call.1} parent=23 // pred_fallthru
          _
        // Predicated region
        $region45: #{tpu_custom_call.1} parent=23 // pred_check
          %p400 = pneg %p191
        $region46: #{tpu_custom_call.1} parent=23 // pred_check_branch
          %402 = sbr.rel (%p400) target = $region48
        $region47: #{tpu_custom_call.1} parent=23 // pred_region
          %p403 = scmp.lt.s32.totalorder %s24, 1
          %s404 = scalar_select %p403, %s24, 1
          %p405 = scmp.lt.s32.totalorder %s25, 0
          %s406 = scalar_select %p405, %s25, 0
          %s407 = smul.addr %s406, 2
          %s408 = smul.addr %s404, 2
          %s409 = sadd.s32 %s407, %s408
          %s410 = smul.addr %s409, 4
          %s411 = scalar_lea.vmem %s5, %s410
        $region48: #{tpu_custom_call.1} parent=23 // pred_fallthru
          _
      $region24: #{tpu_custom_call.1} parent=5 // pred_fallthru
        _
      %p412 = scmp.le.s32.totalorder 1, %s17
      %p413 = scmp.lt.s32.totalorder %s17, 3
      %p414 = pnand %p412, %p413
      %p415 = pneg %p414
      // Predicated region
      $region49: #{tpu_custom_call.1} parent=5 // pred_check
        _
      $region50: #{tpu_custom_call.1} parent=5 // pred_check_branch
        %417 = sbr.rel (%p414) target = $region52
      $region51: #{tpu_custom_call.1} parent=5 // pred_region
        %s418 = ssub.s32 %s17, 1
        %s419 = smul.u32 8, %s27
        %s420 = ssub.s32 9, %s419
        %p421 = scmp.lt.s32.totalorder %s420, 8
        %s422 = scalar_select %p421, %s420, 8
        %s423 = smul.u32 4, %s422
        %s424 = smul.u32 %s423, 2
        %p425 = scmp.lt.s32.totalorder %s26, 1
        %s426 = scalar_select %p425, %s26, 1
        %p427 = scmp.lt.s32.totalorder %s419, 8
        %s428 = scalar_select %p427, %s419, 8
        %s429 = smul.addr %s428, 2
        %s430 = smul.addr %s426, 18
        %s431 = sadd.s32 %s429, %s430
        %s432 = smul.addr %s431, 4
        %s433 = scalar_lea.vmem %s0, %s432
        %p434 = pneg %p57
        %p435 = pneg %p54
        %s436 = smul.u32 8, %s27
        %s437 = ssub.s32 9, %s436
        %p438 = scmp.lt.s32.totalorder %s437, 8
        %s439 = scalar_select %p438, %s437, 8
        %s440 = smul.u32 4, %s439
        %s441 = smul.u32 %s440, 2
        %p442 = scmp.lt.s32.totalorder %s26, 1
        %s443 = scalar_select %p442, %s26, 1
        %p444 = scmp.lt.s32.totalorder %s436, 8
        %s445 = scalar_select %p444, %s436, 8
        %s446 = smul.addr %s445, 2
        %s447 = smul.addr %s443, 18
        %s448 = sadd.s32 %s446, %s447
        %s449 = smul.addr %s448, 4
        %s450 = scalar_lea.vmem %s1, %s449
        %p451 = pneg %p85
        %p452 = pneg %p82
        %s453 = smul.u32 8, %s27
        %s454 = ssub.s32 9, %s453
        %p455 = scmp.lt.s32.totalorder %s454, 8
        %s456 = scalar_select %p455, %s454, 8
        %s457 = smul.u32 4, %s456
        %s458 = smul.u32 %s457, 2
        %p459 = scmp.lt.s32.totalorder %s26, 1
        %s460 = scalar_select %p459, %s26, 1
        %p461 = scmp.lt.s32.totalorder %s453, 8
        %s462 = scalar_select %p461, %s453, 8
        %s463 = smul.addr %s462, 2
        %s464 = smul.addr %s460, 18
        %s465 = sadd.s32 %s463, %s464
        %s466 = smul.addr %s465, 4
        %s467 = scalar_lea.vmem %s2, %s466
        %p468 = pneg %p113
        %p469 = pneg %p110
        %s470 = smul.u32 8, %s27
        %s471 = ssub.s32 9, %s470
        %p472 = scmp.lt.s32.totalorder %s471, 8
        %s473 = scalar_select %p472, %s471, 8
        %s474 = smul.u32 4, %s473
        %s475 = smul.u32 %s474, 2
        %p476 = scmp.lt.s32.totalorder %s26, 1
        %s477 = scalar_select %p476, %s26, 1
        %p478 = scmp.lt.s32.totalorder %s470, 8
        %s479 = scalar_select %p478, %s470, 8
        %s480 = smul.addr %s479, 2
        %s481 = smul.addr %s477, 18
        %s482 = sadd.s32 %s480, %s481
        %s483 = smul.addr %s482, 4
        %s484 = scalar_lea.vmem %s3, %s483
        %p485 = pneg %p141
        %p486 = pneg %p138
        %p487 = scmp.lt.s32.totalorder %s26, 1
        %s488 = scalar_select %p487, %s26, 1
        %p489 = scmp.lt.s32.totalorder %s27, 0
        %s490 = scalar_select %p489, %s27, 0
        %s491 = smul.addr %s490, 2
        %s492 = smul.addr %s488, 2
        %s493 = sadd.s32 %s491, %s492
        %s494 = smul.addr %s493, 4
        %s495 = scalar_lea.vmem %s4, %s494
        %p496 = pneg %p169
        %p497 = pneg %p166
        %p498 = scmp.lt.s32.totalorder %s26, 1
        %s499 = scalar_select %p498, %s26, 1
        %p500 = scmp.lt.s32.totalorder %s27, 0
        %s501 = scalar_select %p500, %s27, 0
        %s502 = smul.addr %s501, 2
        %s503 = smul.addr %s499, 2
        %s504 = sadd.s32 %s502, %s503
        %s505 = smul.addr %s504, 4
        %s506 = scalar_lea.vmem %s5, %s505
        %p507 = pneg %p197
        %p508 = pneg %p194
        %p509 = pneg %p218
        %p510 = pneg %p215
        %p511 = pneg %p239
        %p512 = pneg %p236
        %p513 = pneg %p267
        %p514 = pneg %p264
        %s515 = sand.u32 %s254, 1
        %s516 = scalar_lea.sflag [#allocation3], %s515
        %s517 = sand.u32 %s254, 1
        %s518 = smul.addr %s517, 8
        %s519 = scalar_lea.vmem [#allocation2], %s518
        %s520 = smul.u32 8, %s27
        %s521 = ssub.s32 9, %s520
        %p522 = scmp.lt.s32.totalorder %s521, 8
        %s523 = scalar_select %p522, %s521, 8
        %s524 = smul.u32 4, %s523
        %s525 = smul.u32 %s524, 2
        %p526 = scmp.lt.s32.totalorder %s26, 1
        %s527 = scalar_select %p526, %s26, 1
        %p528 = scmp.lt.s32.totalorder %s520, 8
        %s529 = scalar_select %p528, %s520, 8
        %s530 = smul.addr %s529, 2
        %s531 = smul.addr %s527, 18
        %s532 = sadd.s32 %s530, %s531
        %s533 = smul.addr %s532, 4
        %s534 = scalar_lea.vmem %s0, %s533
        %s535 = smul.u32 8, %s27
        %s536 = ssub.s32 9, %s535
        %p537 = scmp.lt.s32.totalorder %s536, 8
        %s538 = scalar_select %p537, %s536, 8
        %s539 = smul.u32 4, %s538
        %s540 = smul.u32 %s539, 2
        %s541 = smul.u32 8, %s27
        %s542 = ssub.s32 9, %s541
        %p543 = scmp.lt.s32.totalorder %s542, 8
        %s544 = scalar_select %p543, %s542, 8
        %s545 = smul.u32 4, %s544
        %s546 = smul.u32 %s545, 2
        %p547 = scmp.lt.s32.totalorder %s26, 1
        %s548 = scalar_select %p547, %s26, 1
        %p549 = scmp.lt.s32.totalorder %s541, 8
        %s550 = scalar_select %p549, %s541, 8
        %s551 = smul.addr %s550, 2
        %s552 = smul.addr %s548, 18
        %s553 = sadd.s32 %s551, %s552
        %s554 = smul.addr %s553, 4
        %s555 = scalar_lea.vmem %s1, %s554
        %s556 = smul.u32 8, %s27
        %s557 = ssub.s32 9, %s556
        %p558 = scmp.lt.s32.totalorder %s557, 8
        %s559 = scalar_select %p558, %s557, 8
        %s560 = smul.u32 4, %s559
        %s561 = smul.u32 %s560, 2
        %s562 = smul.u32 8, %s27
        %s563 = ssub.s32 9, %s562
        %p564 = scmp.lt.s32.totalorder %s563, 8
        %s565 = scalar_select %p564, %s563, 8
        %s566 = smul.u32 4, %s565
        %s567 = smul.u32 %s566, 2
        %p568 = scmp.lt.s32.totalorder %s26, 1
        %s569 = scalar_select %p568, %s26, 1
        %p570 = scmp.lt.s32.totalorder %s562, 8
        %s571 = scalar_select %p570, %s562, 8
        %s572 = smul.addr %s571, 2
        %s573 = smul.addr %s569, 18
        %s574 = sadd.s32 %s572, %s573
        %s575 = smul.addr %s574, 4
        %s576 = scalar_lea.vmem %s2, %s575
        %s577 = smul.u32 8, %s27
        %s578 = ssub.s32 9, %s577
        %p579 = scmp.lt.s32.totalorder %s578, 8
        %s580 = scalar_select %p579, %s578, 8
        %s581 = smul.u32 4, %s580
        %s582 = smul.u32 %s581, 2
        %s583 = smul.u32 8, %s27
        %s584 = ssub.s32 9, %s583
        %p585 = scmp.lt.s32.totalorder %s584, 8
        %s586 = scalar_select %p585, %s584, 8
        %s587 = smul.u32 4, %s586
        %s588 = smul.u32 %s587, 2
        %p589 = scmp.lt.s32.totalorder %s26, 1
        %s590 = scalar_select %p589, %s26, 1
        %p591 = scmp.lt.s32.totalorder %s583, 8
        %s592 = scalar_select %p591, %s583, 8
        %s593 = smul.addr %s592, 2
        %s594 = smul.addr %s590, 18
        %s595 = sadd.s32 %s593, %s594
        %s596 = smul.addr %s595, 4
        %s597 = scalar_lea.vmem %s3, %s596
        %s598 = smul.u32 8, %s27
        %s599 = ssub.s32 9, %s598
        %p600 = scmp.lt.s32.totalorder %s599, 8
        %s601 = scalar_select %p600, %s599, 8
        %s602 = smul.u32 4, %s601
        %s603 = smul.u32 %s602, 2
        %p604 = scmp.lt.s32.totalorder %s26, 1
        %s605 = scalar_select %p604, %s26, 1
        %p606 = scmp.lt.s32.totalorder %s27, 0
        %s607 = scalar_select %p606, %s27, 0
        %s608 = smul.addr %s607, 2
        %s609 = smul.addr %s605, 2
        %s610 = sadd.s32 %s608, %s609
        %s611 = smul.addr %s610, 4
        %s612 = scalar_lea.vmem %s4, %s611
        %p613 = scmp.lt.s32.totalorder %s26, 1
        %s614 = scalar_select %p613, %s26, 1
        %p615 = scmp.lt.s32.totalorder %s27, 0
        %s616 = scalar_select %p615, %s27, 0
        %s617 = smul.addr %s616, 2
        %s618 = smul.addr %s614, 2
        %s619 = sadd.s32 %s617, %s618
        %s620 = smul.addr %s619, 4
        %s621 = scalar_lea.vmem %s5, %s620
        %v623 = vld [vmem:[%s534] sm:$0xf]
        %v624 = vld [vmem:[%s534 + $0x4] sm:$0x1]
        %v625 = vld [vmem:[%s534 + $0x8] sm:$0xf]
        %v626 = vld [vmem:[%s534 + $0xc] sm:$0x1]
        %v627 = vld [vmem:[%s534 + $0x10] sm:$0xf]
        %v628 = vld [vmem:[%s534 + $0x14] sm:$0x1]
        %v629 = vld [vmem:[%s534 + $0x18] sm:$0xf]
        %v630 = vld [vmem:[%s534 + $0x1c] sm:$0x1]
        %v631 = vld [vmem:[%s534 + $0x20] sm:$0xf]
        %v632 = vld [vmem:[%s534 + $0x24] sm:$0x1]
        %v633 = vld [vmem:[%s534 + $0x28] sm:$0xf]
        %v634 = vld [vmem:[%s534 + $0x2c] sm:$0x1]
        %v635 = vld [vmem:[%s534 + $0x30] sm:$0xf]
        %v636 = vld [vmem:[%s534 + $0x34] sm:$0x1]
        %v637 = vld [vmem:[%s534 + $0x38] sm:$0xf]
        %v638 = vld [vmem:[%s534 + $0x3c] sm:$0x1]
        %v639 = vld [vmem:[%s555] sm:$0xf]
        %v640 = vld [vmem:[%s555 + $0x8] sm:$0xf]
        %v641 = vld [vmem:[%s555 + $0x10] sm:$0xf]
        %v642 = vld [vmem:[%s555 + $0x18] sm:$0xf]
        %v643 = vld [vmem:[%s555 + $0x20] sm:$0xf]
        %v644 = vld [vmem:[%s555 + $0x28] sm:$0xf]
        %v645 = vld [vmem:[%s555 + $0x30] sm:$0xf]
        %v646 = vld [vmem:[%s555 + $0x38] sm:$0xf]
        %v647 = vld [vmem:[%s576] sm:$0xf]
        %v648 = vld [vmem:[%s576 + $0x4] sm:$0x1]
        %v649 = vld [vmem:[%s576 + $0x8] sm:$0xf]
        %v650 = vld [vmem:[%s576 + $0xc] sm:$0x1]
        %v651 = vld [vmem:[%s576 + $0x10] sm:$0xf]
        %v652 = vld [vmem:[%s576 + $0x14] sm:$0x1]
        %v653 = vld [vmem:[%s576 + $0x18] sm:$0xf]
        %v654 = vld [vmem:[%s576 + $0x1c] sm:$0x1]
        %v655 = vld [vmem:[%s576 + $0x20] sm:$0xf]
        %v656 = vld [vmem:[%s576 + $0x24] sm:$0x1]
        %v657 = vld [vmem:[%s576 + $0x28] sm:$0xf]
        %v658 = vld [vmem:[%s576 + $0x2c] sm:$0x1]
        %v659 = vld [vmem:[%s576 + $0x30] sm:$0xf]
        %v660 = vld [vmem:[%s576 + $0x34] sm:$0x1]
        %v661 = vld [vmem:[%s576 + $0x38] sm:$0xf]
        %v662 = vld [vmem:[%s576 + $0x3c] sm:$0x1]
        %v663 = vld [vmem:[%s597] sm:$0xf]
        %v664 = vld [vmem:[%s597 + $0x8] sm:$0xf]
        %v665 = vld [vmem:[%s597 + $0x10] sm:$0xf]
        %v666 = vld [vmem:[%s597 + $0x18] sm:$0xf]
        %v667 = vld [vmem:[%s597 + $0x20] sm:$0xf]
        %v668 = vld [vmem:[%s597 + $0x28] sm:$0xf]
        %v669 = vld [vmem:[%s597 + $0x30] sm:$0xf]
        %v670 = vld [vmem:[%s597 + $0x38] sm:$0xf]
        %v671 = vld [vmem:[%s612] sm:$0xf]
        %v672 = vld [vmem:[%s612 + $0x4] sm:$0x1]
        %v673 = vld [vmem:[%s621] sm:$0xf]
        %v674 = vld [vmem:[%s6] sm:$0xf]
        %s675 = scalar_lea.vmem %s6, 4
        %v676 = vld [vmem:[%s675] sm:$0xf]
        %v685 = vunpack.c.l.b16 %v639
        %v686 = vunpack.c.l.b16 %v640
        %v687 = vunpack.c.l.b16 %v641
        %v688 = vunpack.c.l.b16 %v642
        %v689 = vunpack.c.l.b16 %v643
        %v690 = vunpack.c.l.b16 %v644
        %v691 = vunpack.c.l.b16 %v645
        %v692 = vunpack.c.l.b16 %v646
        %v693 = vpack.c.b16 %v686, %v685
        %v694 = vpack.c.b16 %v688, %v687
        %v695 = vpack.c.b16 %v690, %v689
        %v696 = vpack.c.b16 %v692, %v691
        %vm697 = vcmask 64512
        %v699 = vsel %vm697, %v693, 0
        %v702 = vsel %vm697, %v694, 0
        %v705 = vsel %vm697, %v695, 0
        %v708 = vsel %vm697, %v696, 0
        %vm710 = vcmask 1043456
        %v712 = vsel %vm710, %v676, 0
        %714 = vmatpush.bf16.msra.mxu0 0
        %715 = vmatpush.bf16.msra.mxu0 0
        %716 = vmatpush.bf16.msra.mxu0 0
        %717 = vmatpush.bf16.msra.mxu0 0
        %718 = vmatpush.bf16.msra.mxu0 0
        %719 = vmatpush.bf16.msra.mxu0 0
        %720 = vmatpush.bf16.msra.mxu0 0
        %721 = vmatpush.bf16.msra.mxu0 %v712
        %722 = vmatmul.bf16.gmra.mxu0 %v699
        %v723 = vpop.f32.mrf.mxu0
        %v724 = vadd.f32 0.0, %v723
        %v725 = vpop.f32.mrf.mxu0
        %v726 = vadd.f32 0.0, %v725
        %727 = vmatmul.bf16.gmra.mxu0 %v702
        %v728 = vpop.f32.mrf.mxu0
        %v729 = vadd.f32 0.0, %v728
        %v730 = vpop.f32.mrf.mxu0
        %v731 = vadd.f32 0.0, %v730
        %732 = vmatmul.bf16.gmra.mxu0 %v705
        %v733 = vpop.f32.mrf.mxu0
        %v734 = vadd.f32 0.0, %v733
        %v735 = vpop.f32.mrf.mxu0
        %v736 = vadd.f32 0.0, %v735
        %737 = vmatmul.bf16.gmra.mxu0 %v708
        %v738 = vpop.f32.mrf.mxu0
        %v739 = vadd.f32 0.0, %v738
        %v740 = vpop.f32.mrf.mxu0
        %v741 = vadd.f32 0.0, %v740
        %742 = vdwg.mxu0
        %v751 = vunpack.c.l.b16 %v623
        %v752 = vunpack.c.l.b16 %v625
        %v753 = vunpack.c.l.b16 %v627
        %v754 = vunpack.c.l.b16 %v629
        %v755 = vunpack.c.l.b16 %v631
        %v756 = vunpack.c.l.b16 %v633
        %v757 = vunpack.c.l.b16 %v635
        %v758 = vunpack.c.l.b16 %v637
        %v759 = vpack.c.b16 %v752, %v751
        %v760 = vpack.c.b16 %v754, %v753
        %v761 = vpack.c.b16 %v756, %v755
        %v762 = vpack.c.b16 %v758, %v757
        %v764 = vsel %vm697, %v759, 0
        %v767 = vsel %vm697, %v760, 0
        %v770 = vsel %vm697, %v761, 0
        %v773 = vsel %vm697, %v762, 0
        %v776 = vsel %vm710, %v674, 0
        %778 = vmatpush.bf16.msra.mxu0 0
        %779 = vmatpush.bf16.msra.mxu0 0
        %780 = vmatpush.bf16.msra.mxu0 0
        %781 = vmatpush.bf16.msra.mxu0 0
        %782 = vmatpush.bf16.msra.mxu0 0
        %783 = vmatpush.bf16.msra.mxu0 0
        %784 = vmatpush.bf16.msra.mxu0 0
        %785 = vmatpush.bf16.msra.mxu0 %v776
        %786 = vmatmul.bf16.gmra.mxu0 %v764
        %v787 = vpop.f32.mrf.mxu0
        %v788 = vadd.f32 %v724, %v787
        %v789 = vpop.f32.mrf.mxu0
        %v790 = vadd.f32 %v726, %v789
        %791 = vmatmul.bf16.gmra.mxu0 %v767
        %v792 = vpop.f32.mrf.mxu0
        %v793 = vadd.f32 %v729, %v792
        %v794 = vpop.f32.mrf.mxu0
        %v795 = vadd.f32 %v731, %v794
        %796 = vmatmul.bf16.gmra.mxu0 %v770
        %v797 = vpop.f32.mrf.mxu0
        %v798 = vadd.f32 %v734, %v797
        %v799 = vpop.f32.mrf.mxu0
        %v800 = vadd.f32 %v736, %v799
        %801 = vmatmul.bf16.gmra.mxu0 %v773
        %v802 = vpop.f32.mrf.mxu0
        %v803 = vadd.f32 %v739, %v802
        %v804 = vpop.f32.mrf.mxu0
        %v805 = vadd.f32 %v741, %v804
        %806 = vdwg.mxu0
        %vm807 = vsmask.f32 3328
        %vm808 = vsmask.f32 7440
        %vm809 = vmor %vm807, %vm808
        %v811 = vshrl.u32 %v623, 16
        %v813 = vrot.slane %v811, 4
        %v814 = vshll.u32 %v623, 16
        %v816 = vrot.slane %v814, 5
        %v817 = vor.u32 %v813, %v816
        %v818 = vrot.slane %v817, 4
        %v820 = vshll.u32 %v624, 16
        %v822 = vrot.slane %v820, 5
        %v823 = vsel %vm809, %v818, %v822
        %v825 = vshrl.u32 %v625, 16
        %v827 = vrot.slane %v825, 4
        %v828 = vshll.u32 %v625, 16
        %v830 = vrot.slane %v828, 5
        %v831 = vor.u32 %v827, %v830
        %v832 = vrot.slane %v831, 4
        %v834 = vshll.u32 %v626, 16
        %v836 = vrot.slane %v834, 5
        %v837 = vsel %vm809, %v832, %v836
        %v839 = vshrl.u32 %v627, 16
        %v841 = vrot.slane %v839, 4
        %v842 = vshll.u32 %v627, 16
        %v844 = vrot.slane %v842, 5
        %v845 = vor.u32 %v841, %v844
        %v846 = vrot.slane %v845, 4
        %v848 = vshll.u32 %v628, 16
        %v850 = vrot.slane %v848, 5
        %v851 = vsel %vm809, %v846, %v850
        %v853 = vshrl.u32 %v629, 16
        %v855 = vrot.slane %v853, 4
        %v856 = vshll.u32 %v629, 16
        %v858 = vrot.slane %v856, 5
        %v859 = vor.u32 %v855, %v858
        %v860 = vrot.slane %v859, 4
        %v862 = vshll.u32 %v630, 16
        %v864 = vrot.slane %v862, 5
        %v865 = vsel %vm809, %v860, %v864
        %v867 = vshrl.u32 %v631, 16
        %v869 = vrot.slane %v867, 4
        %v870 = vshll.u32 %v631, 16
        %v872 = vrot.slane %v870, 5
        %v873 = vor.u32 %v869, %v872
        %v874 = vrot.slane %v873, 4
        %v876 = vshll.u32 %v632, 16
        %v878 = vrot.slane %v876, 5
        %v879 = vsel %vm809, %v874, %v878
        %v881 = vshrl.u32 %v633, 16
        %v883 = vrot.slane %v881, 4
        %v884 = vshll.u32 %v633, 16
        %v886 = vrot.slane %v884, 5
        %v887 = vor.u32 %v883, %v886
        %v888 = vrot.slane %v887, 4
        %v890 = vshll.u32 %v634, 16
        %v892 = vrot.slane %v890, 5
        %v893 = vsel %vm809, %v888, %v892
        %v895 = vshrl.u32 %v635, 16
        %v897 = vrot.slane %v895, 4
        %v898 = vshll.u32 %v635, 16
        %v900 = vrot.slane %v898, 5
        %v901 = vor.u32 %v897, %v900
        %v902 = vrot.slane %v901, 4
        %v904 = vshll.u32 %v636, 16
        %v906 = vrot.slane %v904, 5
        %v907 = vsel %vm809, %v902, %v906
        %v909 = vshrl.u32 %v637, 16
        %v911 = vrot.slane %v909, 4
        %v912 = vshll.u32 %v637, 16
        %v914 = vrot.slane %v912, 5
        %v915 = vor.u32 %v911, %v914
        %v916 = vrot.slane %v915, 4
        %v918 = vshll.u32 %v638, 16
        %v920 = vrot.slane %v918, 5
        %v921 = vsel %vm809, %v916, %v920
        %s922 = scalar_lea.vmem %s6, 8
        %v923 = vld [vmem:[%s922] sm:$0xf]
        %v924 = vunpack.c.l.b16 %v823
        %v925 = vunpack.c.l.b16 %v837
        %v926 = vunpack.c.l.b16 %v851
        %v927 = vunpack.c.l.b16 %v865
        %v928 = vunpack.c.l.b16 %v879
        %v929 = vunpack.c.l.b16 %v893
        %v930 = vunpack.c.l.b16 %v907
        %v931 = vunpack.c.l.b16 %v921
        %v932 = vpack.c.b16 %v925, %v924
        %v933 = vpack.c.b16 %v927, %v926
        %v934 = vpack.c.b16 %v929, %v928
        %v935 = vpack.c.b16 %v931, %v930
        %v937 = vsel %vm697, %v932, 0
        %v940 = vsel %vm697, %v933, 0
        %v943 = vsel %vm697, %v934, 0
        %v946 = vsel %vm697, %v935, 0
        %v949 = vsel %vm710, %v923, 0
        %951 = vmatpush.bf16.msra.mxu0 0
        %952 = vmatpush.bf16.msra.mxu0 0
        %953 = vmatpush.bf16.msra.mxu0 0
        %954 = vmatpush.bf16.msra.mxu0 0
        %955 = vmatpush.bf16.msra.mxu0 0
        %956 = vmatpush.bf16.msra.mxu0 0
        %957 = vmatpush.bf16.msra.mxu0 0
        %958 = vmatpush.bf16.msra.mxu0 %v949
        %959 = vmatmul.bf16.gmra.mxu0 %v937
        %v960 = vpop.f32.mrf.mxu0
        %v961 = vadd.f32 0.0, %v960
        %v962 = vpop.f32.mrf.mxu0
        %v963 = vadd.f32 0.0, %v962
        %964 = vmatmul.bf16.gmra.mxu0 %v940
        %v965 = vpop.f32.mrf.mxu0
        %v966 = vadd.f32 0.0, %v965
        %v967 = vpop.f32.mrf.mxu0
        %v968 = vadd.f32 0.0, %v967
        %969 = vmatmul.bf16.gmra.mxu0 %v943
        %v970 = vpop.f32.mrf.mxu0
        %v971 = vadd.f32 0.0, %v970
        %v972 = vpop.f32.mrf.mxu0
        %v973 = vadd.f32 0.0, %v972
        %974 = vmatmul.bf16.gmra.mxu0 %v946
        %v975 = vpop.f32.mrf.mxu0
        %v976 = vadd.f32 0.0, %v975
        %v977 = vpop.f32.mrf.mxu0
        %v978 = vadd.f32 0.0, %v977
        %979 = vdwg.mxu0
        %v980 = vadd.f32 %v788, %v961
        %v981 = vadd.f32 %v790, %v963
        %v982 = vadd.f32 %v793, %v966
        %v983 = vadd.f32 %v795, %v968
        %v984 = vadd.f32 %v798, %v971
        %v985 = vadd.f32 %v800, %v973
        %v986 = vadd.f32 %v803, %v976
        %v987 = vadd.f32 %v805, %v978
        %s988 = scalar_lea.vmem %s6, 12
        %v989 = vld [vmem:[%s988] sm:$0xf]
        %v998 = vunpack.c.l.b16 %v647
        %v999 = vunpack.c.l.b16 %v649
        %v1000 = vunpack.c.l.b16 %v651
        %v1001 = vunpack.c.l.b16 %v653
        %v1002 = vunpack.c.l.b16 %v655
        %v1003 = vunpack.c.l.b16 %v657
        %v1004 = vunpack.c.l.b16 %v659
        %v1005 = vunpack.c.l.b16 %v661
        %v1006 = vpack.c.b16 %v999, %v998
        %v1007 = vpack.c.b16 %v1001, %v1000
        %v1008 = vpack.c.b16 %v1003, %v1002
        %v1009 = vpack.c.b16 %v1005, %v1004
        %v1011 = vsel %vm697, %v1006, 0
        %v1014 = vsel %vm697, %v1007, 0
        %v1017 = vsel %vm697, %v1008, 0
        %v1020 = vsel %vm697, %v1009, 0
        %v1023 = vsel %vm710, %v989, 0
        %1025 = vmatpush.bf16.msra.mxu0 0
        %1026 = vmatpush.bf16.msra.mxu0 0
        %1027 = vmatpush.bf16.msra.mxu0 0
        %1028 = vmatpush.bf16.msra.mxu0 0
        %1029 = vmatpush.bf16.msra.mxu0 0
        %1030 = vmatpush.bf16.msra.mxu0 0
        %1031 = vmatpush.bf16.msra.mxu0 0
        %1032 = vmatpush.bf16.msra.mxu0 %v1023
        %1033 = vmatmul.bf16.gmra.mxu0 %v1011
        %v1034 = vpop.f32.mrf.mxu0
        %v1035 = vadd.f32 0.0, %v1034
        %v1036 = vpop.f32.mrf.mxu0
        %v1037 = vadd.f32 0.0, %v1036
        %1038 = vmatmul.bf16.gmra.mxu0 %v1014
        %v1039 = vpop.f32.mrf.mxu0
        %v1040 = vadd.f32 0.0, %v1039
        %v1041 = vpop.f32.mrf.mxu0
        %v1042 = vadd.f32 0.0, %v1041
        %1043 = vmatmul.bf16.gmra.mxu0 %v1017
        %v1044 = vpop.f32.mrf.mxu0
        %v1045 = vadd.f32 0.0, %v1044
        %v1046 = vpop.f32.mrf.mxu0
        %v1047 = vadd.f32 0.0, %v1046
        %1048 = vmatmul.bf16.gmra.mxu0 %v1020
        %v1049 = vpop.f32.mrf.mxu0
        %v1050 = vadd.f32 0.0, %v1049
        %v1051 = vpop.f32.mrf.mxu0
        %v1052 = vadd.f32 0.0, %v1051
        %1053 = vdwg.mxu0
        %v1054 = vadd.f32 %v980, %v1035
        %v1055 = vadd.f32 %v981, %v1037
        %v1056 = vadd.f32 %v982, %v1040
        %v1057 = vadd.f32 %v983, %v1042
        %v1058 = vadd.f32 %v984, %v1045
        %v1059 = vadd.f32 %v985, %v1047
        %v1060 = vadd.f32 %v986, %v1050
        %v1061 = vadd.f32 %v987, %v1052
        %s1062 = scalar_lea.vmem %s6, 16
        %v1063 = vld [vmem:[%s1062] sm:$0xf]
        %v1072 = vunpack.c.l.b16 %v663
        %v1073 = vunpack.c.l.b16 %v664
        %v1074 = vunpack.c.l.b16 %v665
        %v1075 = vunpack.c.l.b16 %v666
        %v1076 = vunpack.c.l.b16 %v667
        %v1077 = vunpack.c.l.b16 %v668
        %v1078 = vunpack.c.l.b16 %v669
        %v1079 = vunpack.c.l.b16 %v670
        %v1080 = vpack.c.b16 %v1073, %v1072
        %v1081 = vpack.c.b16 %v1075, %v1074
        %v1082 = vpack.c.b16 %v1077, %v1076
        %v1083 = vpack.c.b16 %v1079, %v1078
        %v1085 = vsel %vm697, %v1080, 0
        %v1088 = vsel %vm697, %v1081, 0
        %v1091 = vsel %vm697, %v1082, 0
        %v1094 = vsel %vm697, %v1083, 0
        %v1097 = vsel %vm710, %v1063, 0
        %1099 = vmatpush.bf16.msra.mxu0 0
        %1100 = vmatpush.bf16.msra.mxu0 0
        %1101 = vmatpush.bf16.msra.mxu0 0
        %1102 = vmatpush.bf16.msra.mxu0 0
        %1103 = vmatpush.bf16.msra.mxu0 0
        %1104 = vmatpush.bf16.msra.mxu0 0
        %1105 = vmatpush.bf16.msra.mxu0 0
        %1106 = vmatpush.bf16.msra.mxu0 %v1097
        %1107 = vmatmul.bf16.gmra.mxu0 %v1085
        %v1108 = vpop.f32.mrf.mxu0
        %v1109 = vadd.f32 0.0, %v1108
        %v1110 = vpop.f32.mrf.mxu0
        %v1111 = vadd.f32 0.0, %v1110
        %1112 = vmatmul.bf16.gmra.mxu0 %v1088
        %v1113 = vpop.f32.mrf.mxu0
        %v1114 = vadd.f32 0.0, %v1113
        %v1115 = vpop.f32.mrf.mxu0
        %v1116 = vadd.f32 0.0, %v1115
        %1117 = vmatmul.bf16.gmra.mxu0 %v1091
        %v1118 = vpop.f32.mrf.mxu0
        %v1119 = vadd.f32 0.0, %v1118
        %v1120 = vpop.f32.mrf.mxu0
        %v1121 = vadd.f32 0.0, %v1120
        %1122 = vmatmul.bf16.gmra.mxu0 %v1094
        %v1123 = vpop.f32.mrf.mxu0
        %v1124 = vadd.f32 0.0, %v1123
        %v1125 = vpop.f32.mrf.mxu0
        %v1126 = vadd.f32 0.0, %v1125
        %1127 = vdwg.mxu0
        %v1128 = vadd.f32 %v1054, %v1109
        %v1129 = vadd.f32 %v1055, %v1111
        %v1130 = vadd.f32 %v1056, %v1114
        %v1131 = vadd.f32 %v1057, %v1116
        %v1132 = vadd.f32 %v1058, %v1119
        %v1133 = vadd.f32 %v1059, %v1121
        %v1134 = vadd.f32 %v1060, %v1124
        %v1135 = vadd.f32 %v1061, %v1126
        %v1137 = vshrl.u32 %v647, 16
        %v1139 = vrot.slane %v1137, 4
        %v1140 = vshll.u32 %v647, 16
        %v1142 = vrot.slane %v1140, 5
        %v1143 = vor.u32 %v1139, %v1142
        %v1144 = vrot.slane %v1143, 4
        %v1146 = vshll.u32 %v648, 16
        %v1148 = vrot.slane %v1146, 5
        %v1149 = vsel %vm809, %v1144, %v1148
        %v1151 = vshrl.u32 %v649, 16
        %v1153 = vrot.slane %v1151, 4
        %v1154 = vshll.u32 %v649, 16
        %v1156 = vrot.slane %v1154, 5
        %v1157 = vor.u32 %v1153, %v1156
        %v1158 = vrot.slane %v1157, 4
        %v1160 = vshll.u32 %v650, 16
        %v1162 = vrot.slane %v1160, 5
        %v1163 = vsel %vm809, %v1158, %v1162
        %v1165 = vshrl.u32 %v651, 16
        %v1167 = vrot.slane %v1165, 4
        %v1168 = vshll.u32 %v651, 16
        %v1170 = vrot.slane %v1168, 5
        %v1171 = vor.u32 %v1167, %v1170
        %v1172 = vrot.slane %v1171, 4
        %v1174 = vshll.u32 %v652, 16
        %v1176 = vrot.slane %v1174, 5
        %v1177 = vsel %vm809, %v1172, %v1176
        %v1179 = vshrl.u32 %v653, 16
        %v1181 = vrot.slane %v1179, 4
        %v1182 = vshll.u32 %v653, 16
        %v1184 = vrot.slane %v1182, 5
        %v1185 = vor.u32 %v1181, %v1184
        %v1186 = vrot.slane %v1185, 4
        %v1188 = vshll.u32 %v654, 16
        %v1190 = vrot.slane %v1188, 5
        %v1191 = vsel %vm809, %v1186, %v1190
        %v1193 = vshrl.u32 %v655, 16
        %v1195 = vrot.slane %v1193, 4
        %v1196 = vshll.u32 %v655, 16
        %v1198 = vrot.slane %v1196, 5
        %v1199 = vor.u32 %v1195, %v1198
        %v1200 = vrot.slane %v1199, 4
        %v1202 = vshll.u32 %v656, 16
        %v1204 = vrot.slane %v1202, 5
        %v1205 = vsel %vm809, %v1200, %v1204
        %v1207 = vshrl.u32 %v657, 16
        %v1209 = vrot.slane %v1207, 4
        %v1210 = vshll.u32 %v657, 16
        %v1212 = vrot.slane %v1210, 5
        %v1213 = vor.u32 %v1209, %v1212
        %v1214 = vrot.slane %v1213, 4
        %v1216 = vshll.u32 %v658, 16
        %v1218 = vrot.slane %v1216, 5
        %v1219 = vsel %vm809, %v1214, %v1218
        %v1221 = vshrl.u32 %v659, 16
        %v1223 = vrot.slane %v1221, 4
        %v1224 = vshll.u32 %v659, 16
        %v1226 = vrot.slane %v1224, 5
        %v1227 = vor.u32 %v1223, %v1226
        %v1228 = vrot.slane %v1227, 4
        %v1230 = vshll.u32 %v660, 16
        %v1232 = vrot.slane %v1230, 5
        %v1233 = vsel %vm809, %v1228, %v1232
        %v1235 = vshrl.u32 %v661, 16
        %v1237 = vrot.slane %v1235, 4
        %v1238 = vshll.u32 %v661, 16
        %v1240 = vrot.slane %v1238, 5
        %v1241 = vor.u32 %v1237, %v1240
        %v1242 = vrot.slane %v1241, 4
        %v1244 = vshll.u32 %v662, 16
        %v1246 = vrot.slane %v1244, 5
        %v1247 = vsel %vm809, %v1242, %v1246
        %s1248 = scalar_lea.vmem %s6, 20
        %v1249 = vld [vmem:[%s1248] sm:$0xf]
        %v1250 = vunpack.c.l.b16 %v1149
        %v1251 = vunpack.c.l.b16 %v1163
        %v1252 = vunpack.c.l.b16 %v1177
        %v1253 = vunpack.c.l.b16 %v1191
        %v1254 = vunpack.c.l.b16 %v1205
        %v1255 = vunpack.c.l.b16 %v1219
        %v1256 = vunpack.c.l.b16 %v1233
        %v1257 = vunpack.c.l.b16 %v1247
        %v1258 = vpack.c.b16 %v1251, %v1250
        %v1259 = vpack.c.b16 %v1253, %v1252
        %v1260 = vpack.c.b16 %v1255, %v1254
        %v1261 = vpack.c.b16 %v1257, %v1256
        %v1263 = vsel %vm697, %v1258, 0
        %v1266 = vsel %vm697, %v1259, 0
        %v1269 = vsel %vm697, %v1260, 0
        %v1272 = vsel %vm697, %v1261, 0
        %v1275 = vsel %vm710, %v1249, 0
        %1277 = vmatpush.bf16.msra.mxu0 0
        %1278 = vmatpush.bf16.msra.mxu0 0
        %1279 = vmatpush.bf16.msra.mxu0 0
        %1280 = vmatpush.bf16.msra.mxu0 0
        %1281 = vmatpush.bf16.msra.mxu0 0
        %1282 = vmatpush.bf16.msra.mxu0 0
        %1283 = vmatpush.bf16.msra.mxu0 0
        %1284 = vmatpush.bf16.msra.mxu0 %v1275
        %1285 = vmatmul.bf16.gmra.mxu0 %v1263
        %v1286 = vpop.f32.mrf.mxu0
        %v1287 = vadd.f32 0.0, %v1286
        %v1288 = vpop.f32.mrf.mxu0
        %v1289 = vadd.f32 0.0, %v1288
        %1290 = vmatmul.bf16.gmra.mxu0 %v1266
        %v1291 = vpop.f32.mrf.mxu0
        %v1292 = vadd.f32 0.0, %v1291
        %v1293 = vpop.f32.mrf.mxu0
        %v1294 = vadd.f32 0.0, %v1293
        %1295 = vmatmul.bf16.gmra.mxu0 %v1269
        %v1296 = vpop.f32.mrf.mxu0
        %v1297 = vadd.f32 0.0, %v1296
        %v1298 = vpop.f32.mrf.mxu0
        %v1299 = vadd.f32 0.0, %v1298
        %1300 = vmatmul.bf16.gmra.mxu0 %v1272
        %v1301 = vpop.f32.mrf.mxu0
        %v1302 = vadd.f32 0.0, %v1301
        %v1303 = vpop.f32.mrf.mxu0
        %v1304 = vadd.f32 0.0, %v1303
        %1305 = vdwg.mxu0
        %v1306 = vadd.f32 %v1128, %v1287
        %v1307 = vadd.f32 %v1129, %v1289
        %v1308 = vadd.f32 %v1130, %v1292
        %v1309 = vadd.f32 %v1131, %v1294
        %v1310 = vadd.f32 %v1132, %v1297
        %v1311 = vadd.f32 %v1133, %v1299
        %v1312 = vadd.f32 %v1134, %v1302
        %v1313 = vadd.f32 %v1135, %v1304
        %s1314 = scalar_lea.vmem %s6, 24
        %v1315 = vld [vmem:[%s1314] sm:$0xf]
        %v1317 = vunpack.c.l.b16 %v671
        %v1318 = vpack.c.b16 %v753, %v752
        %v1319 = vpack.c.b16 %v755, %v754
        %v1320 = vpack.c.b16 %v757, %v756
        %v1321 = vpack.c.b16 %v1317, %v758
        %v1323 = vsel %vm697, %v1318, 0
        %v1326 = vsel %vm697, %v1319, 0
        %v1329 = vsel %vm697, %v1320, 0
        %v1332 = vsel %vm697, %v1321, 0
        %v1335 = vsel %vm710, %v1315, 0
        %1337 = vmatpush.bf16.msra.mxu0 0
        %1338 = vmatpush.bf16.msra.mxu0 0
        %1339 = vmatpush.bf16.msra.mxu0 0
        %1340 = vmatpush.bf16.msra.mxu0 0
        %1341 = vmatpush.bf16.msra.mxu0 0
        %1342 = vmatpush.bf16.msra.mxu0 0
        %1343 = vmatpush.bf16.msra.mxu0 0
        %1344 = vmatpush.bf16.msra.mxu0 %v1335
        %1345 = vmatmul.bf16.gmra.mxu0 %v1323
        %v1346 = vpop.f32.mrf.mxu0
        %v1347 = vadd.f32 0.0, %v1346
        %v1348 = vpop.f32.mrf.mxu0
        %v1349 = vadd.f32 0.0, %v1348
        %1350 = vmatmul.bf16.gmra.mxu0 %v1326
        %v1351 = vpop.f32.mrf.mxu0
        %v1352 = vadd.f32 0.0, %v1351
        %v1353 = vpop.f32.mrf.mxu0
        %v1354 = vadd.f32 0.0, %v1353
        %1355 = vmatmul.bf16.gmra.mxu0 %v1329
        %v1356 = vpop.f32.mrf.mxu0
        %v1357 = vadd.f32 0.0, %v1356
        %v1358 = vpop.f32.mrf.mxu0
        %v1359 = vadd.f32 0.0, %v1358
        %1360 = vmatmul.bf16.gmra.mxu0 %v1332
        %v1361 = vpop.f32.mrf.mxu0
        %v1362 = vadd.f32 0.0, %v1361
        %v1363 = vpop.f32.mrf.mxu0
        %v1364 = vadd.f32 0.0, %v1363
        %1365 = vdwg.mxu0
        %v1366 = vadd.f32 %v1306, %v1347
        %v1367 = vadd.f32 %v1307, %v1349
        %v1368 = vadd.f32 %v1308, %v1352
        %v1369 = vadd.f32 %v1309, %v1354
        %v1370 = vadd.f32 %v1310, %v1357
        %v1371 = vadd.f32 %v1311, %v1359
        %v1372 = vadd.f32 %v1312, %v1362
        %v1373 = vadd.f32 %v1313, %v1364
        %s1374 = scalar_lea.vmem %s6, 28
        %v1375 = vld [vmem:[%s1374] sm:$0xf]
        %v1377 = vunpack.c.l.b16 %v673
        %v1378 = vpack.c.b16 %v687, %v686
        %v1379 = vpack.c.b16 %v689, %v688
        %v1380 = vpack.c.b16 %v691, %v690
        %v1381 = vpack.c.b16 %v1377, %v692
        %v1383 = vsel %vm697, %v1378, 0
        %v1386 = vsel %vm697, %v1379, 0
        %v1389 = vsel %vm697, %v1380, 0
        %v1392 = vsel %vm697, %v1381, 0
        %v1395 = vsel %vm710, %v1375, 0
        %1397 = vmatpush.bf16.msra.mxu0 0
        %1398 = vmatpush.bf16.msra.mxu0 0
        %1399 = vmatpush.bf16.msra.mxu0 0
        %1400 = vmatpush.bf16.msra.mxu0 0
        %1401 = vmatpush.bf16.msra.mxu0 0
        %1402 = vmatpush.bf16.msra.mxu0 0
        %1403 = vmatpush.bf16.msra.mxu0 0
        %1404 = vmatpush.bf16.msra.mxu0 %v1395
        %1405 = vmatmul.bf16.gmra.mxu0 %v1383
        %v1406 = vpop.f32.mrf.mxu0
        %v1407 = vadd.f32 0.0, %v1406
        %v1408 = vpop.f32.mrf.mxu0
        %v1409 = vadd.f32 0.0, %v1408
        %1410 = vmatmul.bf16.gmra.mxu0 %v1386
        %v1411 = vpop.f32.mrf.mxu0
        %v1412 = vadd.f32 0.0, %v1411
        %v1413 = vpop.f32.mrf.mxu0
        %v1414 = vadd.f32 0.0, %v1413
        %1415 = vmatmul.bf16.gmra.mxu0 %v1389
        %v1416 = vpop.f32.mrf.mxu0
        %v1417 = vadd.f32 0.0, %v1416
        %v1418 = vpop.f32.mrf.mxu0
        %v1419 = vadd.f32 0.0, %v1418
        %1420 = vmatmul.bf16.gmra.mxu0 %v1392
        %v1421 = vpop.f32.mrf.mxu0
        %v1422 = vadd.f32 0.0, %v1421
        %v1423 = vpop.f32.mrf.mxu0
        %v1424 = vadd.f32 0.0, %v1423
        %1425 = vdwg.mxu0
        %v1426 = vadd.f32 %v1366, %v1407
        %v1427 = vadd.f32 %v1367, %v1409
        %v1428 = vadd.f32 %v1368, %v1412
        %v1429 = vadd.f32 %v1369, %v1414
        %v1430 = vadd.f32 %v1370, %v1417
        %v1431 = vadd.f32 %v1371, %v1419
        %v1432 = vadd.f32 %v1372, %v1422
        %v1433 = vadd.f32 %v1373, %v1424
        %v1435 = vshrl.u32 %v671, 16
        %v1437 = vrot.slane %v1435, 4
        %v1438 = vshll.u32 %v671, 16
        %v1440 = vrot.slane %v1438, 5
        %v1441 = vor.u32 %v1437, %v1440
        %v1442 = vrot.slane %v1441, 4
        %v1444 = vshll.u32 %v672, 16
        %v1446 = vrot.slane %v1444, 5
        %v1447 = vsel %vm809, %v1442, %v1446
        %s1448 = scalar_lea.vmem %s6, 32
        %v1449 = vld [vmem:[%s1448] sm:$0xf]
        %v1450 = vunpack.c.l.b16 %v1447
        %v1451 = vpack.c.b16 %v926, %v925
        %v1452 = vpack.c.b16 %v928, %v927
        %v1453 = vpack.c.b16 %v930, %v929
        %v1454 = vpack.c.b16 %v1450, %v931
        %v1456 = vsel %vm697, %v1451, 0
        %v1459 = vsel %vm697, %v1452, 0
        %v1462 = vsel %vm697, %v1453, 0
        %v1465 = vsel %vm697, %v1454, 0
        %v1468 = vsel %vm710, %v1449, 0
        %1470 = vmatpush.bf16.msra.mxu0 0
        %1471 = vmatpush.bf16.msra.mxu0 0
        %1472 = vmatpush.bf16.msra.mxu0 0
        %1473 = vmatpush.bf16.msra.mxu0 0
        %1474 = vmatpush.bf16.msra.mxu0 0
        %1475 = vmatpush.bf16.msra.mxu0 0
        %1476 = vmatpush.bf16.msra.mxu0 0
        %1477 = vmatpush.bf16.msra.mxu0 %v1468
        %1478 = vmatmul.bf16.gmra.mxu0 %v1456
        %v1479 = vpop.f32.mrf.mxu0
        %v1480 = vadd.f32 0.0, %v1479
        %v1481 = vpop.f32.mrf.mxu0
        %v1482 = vadd.f32 0.0, %v1481
        %1483 = vmatmul.bf16.gmra.mxu0 %v1459
        %v1484 = vpop.f32.mrf.mxu0
        %v1485 = vadd.f32 0.0, %v1484
        %v1486 = vpop.f32.mrf.mxu0
        %v1487 = vadd.f32 0.0, %v1486
        %1488 = vmatmul.bf16.gmra.mxu0 %v1462
        %v1489 = vpop.f32.mrf.mxu0
        %v1490 = vadd.f32 0.0, %v1489
        %v1491 = vpop.f32.mrf.mxu0
        %v1492 = vadd.f32 0.0, %v1491
        %1493 = vmatmul.bf16.gmra.mxu0 %v1465
        %v1494 = vpop.f32.mrf.mxu0
        %v1495 = vadd.f32 0.0, %v1494
        %v1496 = vpop.f32.mrf.mxu0
        %v1497 = vadd.f32 0.0, %v1496
        %1498 = vdwg.mxu0
        %v1499 = vadd.f32 %v1426, %v1480
        %v1500 = vadd.f32 %v1427, %v1482
        %v1501 = vadd.f32 %v1428, %v1485
        %v1502 = vadd.f32 %v1429, %v1487
        %v1503 = vadd.f32 %v1430, %v1490
        %v1504 = vadd.f32 %v1431, %v1492
        %v1505 = vadd.f32 %v1432, %v1495
        %v1506 = vadd.f32 %v1433, %v1497
        %v1507 = vld [vmem:[%s7] sm:$0x1]
        %v1509 = vperm.slane %v1507, 0
        %v1511 = vadd.f32 %v1499, %v1509
        %v1512 = vadd.f32 %v1500, %v1509
        %v1513 = vadd.f32 %v1501, %v1509
        %v1514 = vadd.f32 %v1502, %v1509
        %v1515 = vadd.f32 %v1503, %v1509
        %v1516 = vadd.f32 %v1504, %v1509
        %v1517 = vadd.f32 %v1505, %v1509
        %v1518 = vadd.f32 %v1506, %v1509
        %1519 = vxpose.xlu0.b32.start [1/16] %v1511, 128
        %1520 = vxpose.xlu0.b32.cont [2/16] %v1512, 128
        %1521 = vxpose.xlu0.b32.cont [3/16] %v1513, 128
        %1522 = vxpose.xlu0.b32.cont [4/16] %v1514, 128
        %1523 = vxpose.xlu0.b32.cont [5/16] %v1515, 128
        %1524 = vxpose.xlu0.b32.cont [6/16] %v1516, 128
        %1525 = vxpose.xlu0.b32.cont [7/16] %v1517, 128
        %1526 = vxpose.xlu0.b32.cont [8/16] %v1518, 128
        %1527 = vxpose.xlu0.b32.cont [9/16] 0.0, 128
        %1528 = vxpose.xlu0.b32.cont [10/16] 0.0, 128
        %1529 = vxpose.xlu0.b32.cont [11/16] 0.0, 128
        %1530 = vxpose.xlu0.b32.cont [12/16] 0.0, 128
        %1531 = vxpose.xlu0.b32.cont [13/16] 0.0, 128
        %1532 = vxpose.xlu0.b32.cont [14/16] 0.0, 128
        %1533 = vxpose.xlu0.b32.cont [15/16] 0.0, 128
        %1534 = vxpose.xlu0.b32.end [16/16] 0.0, 128
        %v1535 = vpop.trf.xlu0
        %v1536 = vpop.trf.xlu0
        %v1537 = vpop.trf.xlu0
        %v1538 = vpop.trf.xlu0
        %v1539 = vpop.trf.xlu0
        %v1540 = vpop.trf.xlu0
        %v1541 = vpop.trf.xlu0
        %v1542 = vpop.trf.xlu0
        %v1543 = vpop.trf.xlu0
        %v1544 = vpop.trf.xlu0
        %v1545 = vpop.trf.xlu0
        %v1546 = vpop.trf.xlu0
        %v1547 = vpop.trf.xlu0
        %v1548 = vpop.trf.xlu0
        %v1549 = vpop.trf.xlu0
        %v1550 = vpop.trf.xlu0
        %vm1551 = vcmask 523264
        %1552 = vst.msk [vmem:[%s519] sm:$0xff] %vm1551, %v1535
        %s1553 = sand.u32 %s254, 1
        %s1554 = scalar_lea.sflag [#allocation3], %s1553
        %s1555 = sand.u32 %s254, 1
        %s1556 = smul.addr %s1555, 8
        %s1557 = scalar_lea.vmem [#allocation2], %s1556
        // Predicated region
        $region53: #{tpu_custom_call.1} parent=51 // pred_check
          %p1558 = pneg %p264
        $region54: #{tpu_custom_call.1} parent=51 // pred_check_branch
          %1560 = sbr.rel (%p1558) target = $region56
        $region55: #{tpu_custom_call.1} parent=51 // pred_region
          %1562 = vsyncadd %s1554, 0
          %s1563 = sadd.s32 %s27, %s26
          %s1564 = smul.addr %s1563, 8
          %s1565 = scalar_lea.hbm %s8, %s1564
          %s1567 = sshll.u32 %s1557, 4
          %s1568 = int_to_ptr.vmem [resolvable:$true] %s1567
          %s1569 = sshll.u32 %s1565, 4
          %s1570 = int_to_ptr.hbm [resolvable:$true] %s1569
          %1572 = dma.vmem_to_hbm [thread:$0]  %s1568, 128, %s1570, %s1554
        $region56: #{tpu_custom_call.1} parent=51 // pred_fallthru
          _
      $region52: #{tpu_custom_call.1} parent=5 // pred_fallthru
        _
      %p1573 = scmp.le.s32.totalorder 2, %s17
      // Predicated region
      $region57: #{tpu_custom_call.1} parent=5 // pred_check
        %p1574 = pneg %p1573
      $region58: #{tpu_custom_call.1} parent=5 // pred_check_branch
        %1576 = sbr.rel (%p1574) target = $region60
      $region59: #{tpu_custom_call.1} parent=5 // pred_region
        %s1577 = ssub.s32 %s17, 2
        // Predicated region
        $region61: #{tpu_custom_call.1} parent=59 // pred_check
          %p1578 = pneg %p270
        $region62: #{tpu_custom_call.1} parent=59 // pred_check_branch
          %1580 = sbr.rel (%p1578) target = $region64
        $region63: #{tpu_custom_call.1} parent=59 // pred_region
          %s1581 = sand.u32 %s255, 1
          %s1582 = scalar_lea.sflag [#allocation3], %s1581
          %s1583 = sand.u32 %s255, 1
          %s1584 = smul.addr %s1583, 8
          %s1585 = scalar_lea.vmem [#allocation2], %s1584
          %1587 = dma.done %s1582, 128
        $region64: #{tpu_custom_call.1} parent=59 // pred_fallthru
          _
      $region60: #{tpu_custom_call.1} parent=5 // pred_fallthru
        _
    $region6: #{tpu_custom_call.1} parent=1 // loop_footer
      %s21 = sadd.s32 1, %s17
    $region7: #{tpu_custom_call.1} parent=1 // loop_footer_branch
      %16 = sbr.rel target = $region3
    $region8: #{tpu_custom_call.1} parent=1 // loop_exit
      _
    %1588 = vsyncpa [#allocation3], 1
    %s1589 = scalar_lea.sflag [#allocation3], 1
    %1590 = vsyncpa %s1589, 1

</llo_original>
